<compile_context>
chip_gen: v6e
topology: v6e:2x2x1
jax: 0.10.0
libtpu: 0.0.40
codegen_flags: <defaults>
</compile_context>

<pallas_src>
import jax
import jax.numpy as jnp
from jax.experimental import pallas as pl
from jax.experimental.pallas import tpu as pltpu


def _full_spec(shape):
    nd = len(shape)
    return pl.BlockSpec(shape, lambda i, _nd=nd: (0,) * _nd)


def decoder_kernel(ztaug_ref, fcw_ref, w01_ref, p128_ref, w1_ref, p64_ref, out_ref):
    _, B = ztaug_ref.shape
    C0L = fcw_ref.shape[0]
    C0KI, twoNC1 = w01_ref.shape
    NC1 = twoNC1 // 2                      # 128
    KDNC1, NC2 = w1_ref.shape
    KD = KDNC1 // NC1                      # 5
    KI = 3                                 # initial_decoder kernel size
    C0 = C0KI // KI
    L = C0L // C0
    BL = B * L
    PD1 = (KI - 1) // 2                    # 1
    PD2 = (KD - 1) // 2                    # 2
    n = float(BL)
    eps = 1e-5

    # Per-row time index (0..L-1, repeated per batch): zeroes conv taps that fall outside
    # [0, L) after rolling along the flattened (b, t) row axis.
    t_blk = jax.lax.broadcasted_iota(jnp.int32, (L, 1), 0).astype(jnp.float32)
    tcol = jnp.concatenate([t_blk] * B, axis=0)                       # (BL, 1)

    def shifted(v, d):
        # v has rows (b, t); returns v at rows (b, t + d), zeroed where t + d is out of
        # range.  pltpu.roll keeps the shift on the XLU; the mask is a cheap VPU multiply.
        if d == 0:
            return v
        r = pltpu.roll(v, shift=(-d) % BL, axis=0)
        if d > 0:
            valid = jnp.where(tcol < float(L - d), 1.0, 0.0)
        else:
            valid = jnp.where(tcol >= float(-d), 1.0, 0.0)
        return r * valid

    # ---- fc (nn.Linear bias folded in via the ones row of ztaug):
    #      x_t[c*L + t, b] == fc(z).view(B, C0, L)[b, c, t]
    x_t = jnp.dot(fcw_ref[...], ztaug_ref[...], preferred_element_type=jnp.float32)

    # One-time handoff to rows=(b, t), lanes=c on the tiny C0-channel tensor (a
    # lane<->sublane relayout is unavoidable at this boundary; B*C0 sublane-preserving
    # slices avoid relying on an in-kernel reshape).  TODO(synk): at large batch, tile
    # the grid over batch (two-pass BatchNorm) instead of unrolling this B*C0 handoff.
    x_flat = jnp.concatenate(
        [jnp.concatenate([x_t[c * L:(c + 1) * L, b:b + 1] for c in range(C0)], axis=1)
         for b in range(B)], axis=0)                                  # (BL, C0)

    # ---- initial_decoder ConvTranspose1d(C0->128, k=3, p=1) fused with the residual
    #      ConvTranspose1d(C0->128, k=1): one (BL, 3*C0) x (3*C0, 256) MXU matmul.
    taps1 = jnp.concatenate([shifted(x_flat, j - PD1) for j in range(KI)], axis=1)
    hr = jnp.dot(taps1, w01_ref[...], preferred_element_type=jnp.float32)   # (BL, 256)
    h1 = hr[:, :NC1] + p128_ref[0:1, :]                               # + initial bias
    res = hr[:, NC1:] + p128_ref[1:2, :]                              # + residual bias

    # ---- BatchNorm1d(128) with batch statistics over (B, L), then ReLU, then + residual.
    mu1 = jnp.sum(h1, axis=0, keepdims=True) * (1.0 / n)
    var1 = jnp.sum((h1 - mu1) ** 2, axis=0, keepdims=True) * (1.0 / n)
    h = (h1 - mu1) * jax.lax.rsqrt(var1 + eps) * p128_ref[2:3, :] + p128_ref[3:4, :]
    h = jnp.maximum(h, 0.0) + res                                     # (BL, 128)

    # ---- decoder ConvTranspose1d(128->64, k=5, p=2): five accumulating
    #      (BL, 128) x (128, 64) MXU matmuls; the (BL, 640) tap concat is never built.
    # NOTE: on v6e/v7x, casting the operands to bfloat16 (f32 accumulation) doubles the
    # MXU rate; kept f32 here to stay tight against PyTorch f32 numerics.
    h2 = jnp.dot(h, w1_ref[PD2 * NC1:(PD2 + 1) * NC1, :],
                 preferred_element_type=jnp.float32)                  # center tap
    for j in range(KD):
        if j == PD2:
            continue
        h2 = h2 + jnp.dot(shifted(h, j - PD2), w1_ref[j * NC1:(j + 1) * NC1, :],
                          preferred_element_type=jnp.float32)
    h2 = h2 + p64_ref[0:1, :]                                         # + dec1 bias

    # ---- BatchNorm1d(64) + ReLU.
    mu2 = jnp.sum(h2, axis=0, keepdims=True) * (1.0 / n)
    var2 = jnp.sum((h2 - mu2) ** 2, axis=0, keepdims=True) * (1.0 / n)
    h2 = jnp.maximum((h2 - mu2) * jax.lax.rsqrt(var2 + eps) * p64_ref[1:2, :]
                     + p64_ref[2:3, :], 0.0)

    # ---- decoder ConvTranspose1d(64->1, k=5, p=2): single output channel, so accumulate
    #      tap * weight-row products on the VPU and do ONE lane reduction (XLU) at the end
    #      instead of an N=1 MXU matmul.
    acc = h2 * p64_ref[3 + PD2:4 + PD2, :]                            # center tap
    for j in range(KD):
        if j == PD2:
            continue
        acc = acc + shifted(h2, j - PD2) * p64_ref[3 + j:4 + j, :]
    y = jnp.sum(acc, axis=1, keepdims=True) + p64_ref[3 + KD:4 + KD, 0:1]

    # Softplus (beta=1, threshold=20), as in torch.nn.Softplus.
    y = jnp.where(y > 20.0, y, jnp.log(1.0 + jnp.exp(jnp.minimum(y, 20.0))))

    # At production L this (BL, 1) slab should be written lane-dense (e.g. transposed to
    # (1, BL)); at L=16 the masked store is negligible.
    out_ref[...] = y


def init_params(key, latent_dim, latent_channel, seq_length):
    C0, L, D = latent_channel, seq_length, latent_dim
    ks = jax.random.split(key, 14)

    def n(k, shape, s=0.1):
        return jax.random.normal(k, shape, jnp.float32) * s

    return dict(
        fc_w=n(ks[0], (C0 * L, D)),            # nn.Linear(D, C0*L).weight  (out, in)
        fc_b=n(ks[1], (C0 * L,)),
        init_w=n(ks[2], (C0, 128, 3)),         # ConvTranspose1d(C0, 128, 3).weight (Cin, Cout, K)
        init_b=n(ks[3], (128,)),
        bn1_g=1.0 + n(ks[4], (128,)),
        bn1_b=n(ks[5], (128,)),
        res_w=n(ks[6], (C0, 128, 1)),          # ConvTranspose1d(C0, 128, 1).weight
        res_b=n(ks[7], (128,)),
        dec1_w=n(ks[8], (128, 64, 5)),         # ConvTranspose1d(128, 64, 5).weight
        dec1_b=n(ks[9], (64,)),
        bn2_g=1.0 + n(ks[10], (64,)),
        bn2_b=n(ks[11], (64,)),
        dec2_w=n(ks[12], (64, 1, 5)),          # ConvTranspose1d(64, 1, 5).weight
        dec2_b=n(ks[13], (1,)),
    )


def residual_cnn_decoder(z, params, latent_channel, seq_length):
    """Pallas implementation of ResidualCNNDecoder.forward. Returns (B, 1, L)."""
    B, D = z.shape
    C0, L = latent_channel, seq_length
    NC1, NC2, KI, KD = 128, 64, 3, 5
    p = params

    # --- parameter plumbing (pure layout glue, done once outside the kernel):
    # ConvTranspose1d weights (Cin, Cout, K) in tap-major "conv form":
    #   y[t] = sum_j x[t + j - pad] . W_tap[j],  with  W_tap[j] = W[..., K-1-j].
    fcw_aug = jnp.concatenate([p['fc_w'], p['fc_b'][:, None]], axis=1)            # (C0*L, D+1)
    ztaug = jnp.concatenate([jnp.transpose(z), jnp.ones((1, B), z.dtype)], axis=0)  # (D+1, B)

    wi = jnp.transpose(jnp.flip(p['init_w'], 2), (2, 0, 1)).reshape(KI * C0, NC1)
    wr = jnp.zeros((KI, C0, NC1), jnp.float32).at[1].set(p['res_w'][:, :, 0])
    w01 = jnp.concatenate([wi, wr.reshape(KI * C0, NC1)], axis=1)                 # (12, 256)

    p128 = jnp.stack([p['init_b'], p['res_b'], p['bn1_g'], p['bn1_b']], axis=0)   # (4, 128)

    w1 = jnp.transpose(jnp.flip(p['dec1_w'], 2), (2, 0, 1)).reshape(KD * NC1, NC2)  # (640, 64)

    w2 = jnp.transpose(jnp.flip(p['dec2_w'], 2)[:, 0, :], (1, 0))                 # (5, 64)
    p64 = jnp.concatenate(
        [p['dec1_b'][None, :], p['bn2_g'][None, :], p['bn2_b'][None, :], w2,
         jnp.full((1, NC2), p['dec2_b'][0], jnp.float32)], axis=0)                # (9, 64)

    inputs = (ztaug, fcw_aug, w01, p128, w1, p64)

    # BatchNorm couples every (b, t) row and the whole problem fits in VMEM at these
    # sizes, so a single grid step on one TensorCore is used.  At production L/B, tile
    # the (B*L) row axis with a real grid + two-pass BN (pl.when-gated partial stats),
    # mark the row axis "parallel" for v7x's 2 TensorCores, and set vmem_limit_bytes
    # explicitly (v5e scoped default 16 MiB; v7x physical VMEM 64 MiB).
    out_flat = pl.pallas_call(
        decoder_kernel,
        out_shape=jax.ShapeDtypeStruct((B * L, 1), jnp.float32),
        grid=(1,),
        in_specs=[_full_spec(a.shape) for a in inputs],
        out_specs=_full_spec((B * L, 1)),
        compiler_params=pltpu.CompilerParams(dimension_semantics=("arbitrary",)),
    )(*inputs)
    return out_flat.reshape(B, L)[:, None, :]


def ref_forward(z, p, latent_channel, seq_length):
    """Pure-JAX reference that follows the PyTorch definitions directly (NCL layout)."""
    B = z.shape[0]
    C0, L = latent_channel, seq_length
    x = z @ p['fc_w'].T + p['fc_b']
    x = x.reshape(B, C0, L)

    def convT(x, w, b, pad):
        Cin, Cout, K = w.shape
        xp = jnp.pad(x, ((0, 0), (0, 0), (K, K)))
        y = jnp.zeros((B, Cout, L), jnp.float32) + b[None, :, None]
        for kk in range(K):
            xs = xp[:, :, K + pad - kk:K + pad - kk + L]   # x[..., t + pad - kk]
            y = y + jnp.einsum('bct,cd->bdt', xs, w[:, :, kk])
        return y

    def bn(h, g, bta):
        m = jnp.mean(h, axis=(0, 2), keepdims=True)
        v = jnp.mean((h - m) ** 2, axis=(0, 2), keepdims=True)
        return (h - m) / jnp.sqrt(v + 1e-5) * g[None, :, None] + bta[None, :, None]

    residual = convT(x, p['res_w'], p['res_b'], 0)
    h = convT(x, p['init_w'], p['init_b'], 1)
    h = jnp.maximum(bn(h, p['bn1_g'], p['bn1_b']), 0.0)
    h = h + residual
    h = convT(h, p['dec1_w'], p['dec1_b'], 2)
    h = jnp.maximum(bn(h, p['bn2_g'], p['bn2_b']), 0.0)
    h = convT(h, p['dec2_w'], p['dec2_b'], 2)
    return jnp.where(h > 20.0, h, jnp.log(1.0 + jnp.exp(jnp.minimum(h, 20.0))))


if __name__ == "__main__":
    latent_dim, latent_channel, seq_length = 32, 4, 16
    batch = 2

    key = jax.random.PRNGKey(0)
    kp, kz = jax.random.split(key)
    params = init_params(kp, latent_dim, latent_channel, seq_length)
    z = jax.random.normal(kz, (batch, latent_dim), jnp.float32)

    out = residual_cnn_decoder(z, params, latent_channel, seq_length)
    out = jax.block_until_ready(out)

    ref = ref_forward(z, params, latent_channel, seq_length)
    assert out.shape == (batch, 1, seq_length), out.shape
    assert jnp.allclose(out, ref, rtol=2e-3, atol=2e-3), (
        float(jnp.max(jnp.abs(out - ref))))

    print("KERNEL_OK")
</pallas_src>

<mosaic_0001>
module attributes {stable_mosaic.version = 11 : i64} {
  func.func @decoder_kernel(%arg0: i32, %arg1: memref<33x2xf32, #tpu.memory_space<vmem>>, %arg2: memref<64x33xf32, #tpu.memory_space<vmem>>, %arg3: memref<12x256xf32, #tpu.memory_space<vmem>>, %arg4: memref<4x128xf32, #tpu.memory_space<vmem>>, %arg5: memref<640x64xf32, #tpu.memory_space<vmem>>, %arg6: memref<9x64xf32, #tpu.memory_space<vmem>>, %arg7: memref<32x1xf32, #tpu.memory_space<vmem>>) attributes {dimension_semantics = [#tpu.dimension_semantics<arbitrary>], iteration_bounds = array<i64: 1>, scalar_prefetch = 0 : i64, scratch_operands = 0 : i64, tpu.core_type = #tpu.core_type<tc>, window_params = [{pipeline_mode = #tpu.pipeline_mode<synchronous>, transform_indices = @transform_0, window_bounds = array<i64: 33, 2>}, {pipeline_mode = #tpu.pipeline_mode<synchronous>, transform_indices = @transform_1, window_bounds = array<i64: 64, 33>}, {pipeline_mode = #tpu.pipeline_mode<synchronous>, transform_indices = @transform_2, window_bounds = array<i64: 12, 256>}, {pipeline_mode = #tpu.pipeline_mode<synchronous>, transform_indices = @transform_3, window_bounds = array<i64: 4, 128>}, {pipeline_mode = #tpu.pipeline_mode<synchronous>, transform_indices = @transform_4, window_bounds = array<i64: 640, 64>}, {pipeline_mode = #tpu.pipeline_mode<synchronous>, transform_indices = @transform_5, window_bounds = array<i64: 9, 64>}, {pipeline_mode = #tpu.pipeline_mode<synchronous>, transform_indices = @transform_6, window_bounds = array<i64: 32, 1>}]} {
    %0 = tpu.iota {dimensions = array<i32: 0>} : vector<16x1xi32>
    %1 = arith.sitofp %0 : vector<16x1xi32> to vector<16x1xf32>
    %2 = tpu.concatenate %1, %1 in 0 : vector<16x1xf32>, vector<16x1xf32> -> vector<32x1xf32>
    %c0 = arith.constant 0 : index
    %c0_0 = arith.constant 0 : index
    %3 = vector.load %arg2[%c0, %c0_0] : memref<64x33xf32, #tpu.memory_space<vmem>>, vector<64x33xf32>
    %c0_1 = arith.constant 0 : index
    %c0_2 = arith.constant 0 : index
    %4 = vector.load %arg1[%c0_1, %c0_2] : memref<33x2xf32, #tpu.memory_space<vmem>>, vector<33x2xf32>
    %cst = arith.constant dense<0.000000e+00> : vector<64x2xf32>
    %5 = tpu.matmul %3, %4, %cst {dimension_numbers = #tpu.dot_dimension_numbers<[1], [0], [0], [1], [0, 0, 1, 1], [], []>} : vector<64x33xf32>, vector<33x2xf32>, vector<64x2xf32> -> vector<64x2xf32>
    %6 = vector.extract_strided_slice %5 {offsets = [0, 0], sizes = [16, 1], strides = [1, 1]} : vector<64x2xf32> to vector<16x1xf32>
    %7 = vector.extract_strided_slice %5 {offsets = [16, 0], sizes = [16, 1], strides = [1, 1]} : vector<64x2xf32> to vector<16x1xf32>
    %8 = vector.extract_strided_slice %5 {offsets = [32, 0], sizes = [16, 1], strides = [1, 1]} : vector<64x2xf32> to vector<16x1xf32>
    %9 = vector.extract_strided_slice %5 {offsets = [48, 0], sizes = [16, 1], strides = [1, 1]} : vector<64x2xf32> to vector<16x1xf32>
    %10 = tpu.concatenate %6, %7, %8, %9 in 1 : vector<16x1xf32>, vector<16x1xf32>, vector<16x1xf32>, vector<16x1xf32> -> vector<16x4xf32>
    %11 = vector.extract_strided_slice %5 {offsets = [0, 1], sizes = [16, 1], strides = [1, 1]} : vector<64x2xf32> to vector<16x1xf32>
    %12 = vector.extract_strided_slice %5 {offsets = [16, 1], sizes = [16, 1], strides = [1, 1]} : vector<64x2xf32> to vector<16x1xf32>
    %13 = vector.extract_strided_slice %5 {offsets = [32, 1], sizes = [16, 1], strides = [1, 1]} : vector<64x2xf32> to vector<16x1xf32>
    %14 = vector.extract_strided_slice %5 {offsets = [48, 1], sizes = [16, 1], strides = [1, 1]} : vector<64x2xf32> to vector<16x1xf32>
    %15 = tpu.concatenate %11, %12, %13, %14 in 1 : vector<16x1xf32>, vector<16x1xf32>, vector<16x1xf32>, vector<16x1xf32> -> vector<16x4xf32>
    %16 = tpu.concatenate %10, %15 in 0 : vector<16x4xf32>, vector<16x4xf32> -> vector<32x4xf32>
    %c1_i32 = arith.constant 1 : i32
    %17 = tpu.dynamic_rotate %16 by %c1_i32 dim 0 : vector<32x4xf32>, i32 -> vector<32x4xf32>
    %cst_3 = arith.constant 1.000000e+00 : f32
    %18 = vector.broadcast %cst_3 : f32 to vector<32x1xf32>
    %19 = arith.cmpf oge, %2, %18 : vector<32x1xf32>
    %cst_4 = arith.constant 1.000000e+00 : f32
    %cst_5 = arith.constant 0.000000e+00 : f32
    %20 = vector.broadcast %cst_4 : f32 to vector<32x1xf32>
    %21 = vector.broadcast %cst_5 : f32 to vector<32x1xf32>
    %22 = arith.select %19, %20, %21 : vector<32x1xi1>, vector<32x1xf32>
    %23 = vector.broadcast %22 : vector<32x1xf32> to vector<32x4xf32>
    %24 = arith.mulf %17, %23 : vector<32x4xf32>
    %c31_i32 = arith.constant 31 : i32
    %25 = tpu.dynamic_rotate %16 by %c31_i32 dim 0 : vector<32x4xf32>, i32 -> vector<32x4xf32>
    %cst_6 = arith.constant 1.500000e+01 : f32
    %26 = vector.broadcast %cst_6 : f32 to vector<32x1xf32>
    %27 = arith.cmpf olt, %2, %26 : vector<32x1xf32>
    %cst_7 = arith.constant 1.000000e+00 : f32
    %cst_8 = arith.constant 0.000000e+00 : f32
    %28 = vector.broadcast %cst_7 : f32 to vector<32x1xf32>
    %29 = vector.broadcast %cst_8 : f32 to vector<32x1xf32>
    %30 = arith.select %27, %28, %29 : vector<32x1xi1>, vector<32x1xf32>
    %31 = vector.broadcast %30 : vector<32x1xf32> to vector<32x4xf32>
    %32 = arith.mulf %25, %31 : vector<32x4xf32>
    %33 = tpu.concatenate %24, %16, %32 in 1 : vector<32x4xf32>, vector<32x4xf32>, vector<32x4xf32> -> vector<32x12xf32>
    %c0_9 = arith.constant 0 : index
    %c0_10 = arith.constant 0 : index
    %34 = vector.load %arg3[%c0_9, %c0_10] : memref<12x256xf32, #tpu.memory_space<vmem>>, vector<12x256xf32>
    %cst_11 = arith.constant dense<0.000000e+00> : vector<32x256xf32>
    %35 = tpu.matmul %33, %34, %cst_11 {dimension_numbers = #tpu.dot_dimension_numbers<[1], [0], [0], [1], [0, 0, 1, 1], [], []>} : vector<32x12xf32>, vector<12x256xf32>, vector<32x256xf32> -> vector<32x256xf32>
    %36 = vector.extract_strided_slice %35 {offsets = [0, 0], sizes = [32, 128], strides = [1, 1]} : vector<32x256xf32> to vector<32x128xf32>
    %c0_12 = arith.constant 0 : index
    %c0_13 = arith.constant 0 : index
    %37 = vector.load %arg4[%c0_12, %c0_13] : memref<4x128xf32, #tpu.memory_space<vmem>>, vector<1x128xf32>
    %38 = vector.broadcast %37 : vector<1x128xf32> to vector<32x128xf32>
    %39 = arith.addf %36, %38 : vector<32x128xf32>
    %40 = vector.extract_strided_slice %35 {offsets = [0, 128], sizes = [32, 128], strides = [1, 1]} : vector<32x256xf32> to vector<32x128xf32>
    %c1 = arith.constant 1 : index
    %c0_14 = arith.constant 0 : index
    %41 = vector.load %arg4[%c1, %c0_14] : memref<4x128xf32, #tpu.memory_space<vmem>>, vector<1x128xf32>
    %42 = vector.broadcast %41 : vector<1x128xf32> to vector<32x128xf32>
    %43 = arith.addf %40, %42 : vector<32x128xf32>
    %cst_15 = arith.constant dense<0.000000e+00> : vector<128xf32>
    %44 = vector.multi_reduction <add>, %39, %cst_15 [0] : vector<32x128xf32> to vector<128xf32>
    %45 = vector.shape_cast %44 : vector<128xf32> to vector<1x128xf32>
    %cst_16 = arith.constant 3.125000e-02 : f32
    %46 = vector.broadcast %cst_16 : f32 to vector<1x128xf32>
    %47 = arith.mulf %45, %46 : vector<1x128xf32>
    %48 = vector.broadcast %47 : vector<1x128xf32> to vector<32x128xf32>
    %49 = arith.subf %39, %48 : vector<32x128xf32>
    %50 = arith.mulf %49, %49 : vector<32x128xf32>
    %cst_17 = arith.constant dense<0.000000e+00> : vector<128xf32>
    %51 = vector.multi_reduction <add>, %50, %cst_17 [0] : vector<32x128xf32> to vector<128xf32>
    %52 = vector.shape_cast %51 : vector<128xf32> to vector<1x128xf32>
    %cst_18 = arith.constant 3.125000e-02 : f32
    %53 = vector.broadcast %cst_18 : f32 to vector<1x128xf32>
    %54 = arith.mulf %52, %53 : vector<1x128xf32>
    %55 = vector.broadcast %47 : vector<1x128xf32> to vector<32x128xf32>
    %56 = arith.subf %39, %55 : vector<32x128xf32>
    %cst_19 = arith.constant 9.99999974E-6 : f32
    %57 = vector.broadcast %cst_19 : f32 to vector<1x128xf32>
    %58 = arith.addf %54, %57 : vector<1x128xf32>
    %59 = math.rsqrt %58 : vector<1x128xf32>
    %60 = vector.broadcast %59 : vector<1x128xf32> to vector<32x128xf32>
    %61 = arith.mulf %56, %60 : vector<32x128xf32>
    %c2 = arith.constant 2 : index
    %c0_20 = arith.constant 0 : index
    %62 = vector.load %arg4[%c2, %c0_20] : memref<4x128xf32, #tpu.memory_space<vmem>>, vector<1x128xf32>
    %63 = vector.broadcast %62 : vector<1x128xf32> to vector<32x128xf32>
    %64 = arith.mulf %61, %63 : vector<32x128xf32>
    %c3 = arith.constant 3 : index
    %c0_21 = arith.constant 0 : index
    %65 = vector.load %arg4[%c3, %c0_21] : memref<4x128xf32, #tpu.memory_space<vmem>>, vector<1x128xf32>
    %66 = vector.broadcast %65 : vector<1x128xf32> to vector<32x128xf32>
    %67 = arith.addf %64, %66 : vector<32x128xf32>
    %cst_22 = arith.constant 0.000000e+00 : f32
    %68 = vector.broadcast %cst_22 : f32 to vector<32x128xf32>
    %69 = arith.maximumf %67, %68 : vector<32x128xf32>
    %70 = arith.addf %69, %43 : vector<32x128xf32>
    %c256 = arith.constant 256 : index
    %c0_23 = arith.constant 0 : index
    %71 = vector.load %arg5[%c256, %c0_23] : memref<640x64xf32, #tpu.memory_space<vmem>>, vector<128x64xf32>
    %cst_24 = arith.constant dense<0.000000e+00> : vector<32x64xf32>
    %72 = tpu.matmul %70, %71, %cst_24 {dimension_numbers = #tpu.dot_dimension_numbers<[1], [0], [0], [1], [0, 0, 1, 1], [], []>} : vector<32x128xf32>, vector<128x64xf32>, vector<32x64xf32> -> vector<32x64xf32>
    %c2_i32 = arith.constant 2 : i32
    %73 = tpu.dynamic_rotate %70 by %c2_i32 dim 0 : vector<32x128xf32>, i32 -> vector<32x128xf32>
    %cst_25 = arith.constant 2.000000e+00 : f32
    %74 = vector.broadcast %cst_25 : f32 to vector<32x1xf32>
    %75 = arith.cmpf oge, %2, %74 : vector<32x1xf32>
    %cst_26 = arith.constant 1.000000e+00 : f32
    %cst_27 = arith.constant 0.000000e+00 : f32
    %76 = vector.broadcast %cst_26 : f32 to vector<32x1xf32>
    %77 = vector.broadcast %cst_27 : f32 to vector<32x1xf32>
    %78 = arith.select %75, %76, %77 : vector<32x1xi1>, vector<32x1xf32>
    %79 = vector.broadcast %78 : vector<32x1xf32> to vector<32x128xf32>
    %80 = arith.mulf %73, %79 : vector<32x128xf32>
    %c0_28 = arith.constant 0 : index
    %c0_29 = arith.constant 0 : index
    %81 = vector.load %arg5[%c0_28, %c0_29] : memref<640x64xf32, #tpu.memory_space<vmem>>, vector<128x64xf32>
    %cst_30 = arith.constant dense<0.000000e+00> : vector<32x64xf32>
    %82 = tpu.matmul %80, %81, %cst_30 {dimension_numbers = #tpu.dot_dimension_numbers<[1], [0], [0], [1], [0, 0, 1, 1], [], []>} : vector<32x128xf32>, vector<128x64xf32>, vector<32x64xf32> -> vector<32x64xf32>
    %83 = arith.addf %72, %82 : vector<32x64xf32>
    %c1_i32_31 = arith.constant 1 : i32
    %84 = tpu.dynamic_rotate %70 by %c1_i32_31 dim 0 : vector<32x128xf32>, i32 -> vector<32x128xf32>
    %cst_32 = arith.constant 1.000000e+00 : f32
    %85 = vector.broadcast %cst_32 : f32 to vector<32x1xf32>
    %86 = arith.cmpf oge, %2, %85 : vector<32x1xf32>
    %cst_33 = arith.constant 1.000000e+00 : f32
    %cst_34 = arith.constant 0.000000e+00 : f32
    %87 = vector.broadcast %cst_33 : f32 to vector<32x1xf32>
    %88 = vector.broadcast %cst_34 : f32 to vector<32x1xf32>
    %89 = arith.select %86, %87, %88 : vector<32x1xi1>, vector<32x1xf32>
    %90 = vector.broadcast %89 : vector<32x1xf32> to vector<32x128xf32>
    %91 = arith.mulf %84, %90 : vector<32x128xf32>
    %c128 = arith.constant 128 : index
    %c0_35 = arith.constant 0 : index
    %92 = vector.load %arg5[%c128, %c0_35] : memref<640x64xf32, #tpu.memory_space<vmem>>, vector<128x64xf32>
    %cst_36 = arith.constant dense<0.000000e+00> : vector<32x64xf32>
    %93 = tpu.matmul %91, %92, %cst_36 {dimension_numbers = #tpu.dot_dimension_numbers<[1], [0], [0], [1], [0, 0, 1, 1], [], []>} : vector<32x128xf32>, vector<128x64xf32>, vector<32x64xf32> -> vector<32x64xf32>
    %94 = arith.addf %83, %93 : vector<32x64xf32>
    %c31_i32_37 = arith.constant 31 : i32
    %95 = tpu.dynamic_rotate %70 by %c31_i32_37 dim 0 : vector<32x128xf32>, i32 -> vector<32x128xf32>
    %cst_38 = arith.constant 1.500000e+01 : f32
    %96 = vector.broadcast %cst_38 : f32 to vector<32x1xf32>
    %97 = arith.cmpf olt, %2, %96 : vector<32x1xf32>
    %cst_39 = arith.constant 1.000000e+00 : f32
    %cst_40 = arith.constant 0.000000e+00 : f32
    %98 = vector.broadcast %cst_39 : f32 to vector<32x1xf32>
    %99 = vector.broadcast %cst_40 : f32 to vector<32x1xf32>
    %100 = arith.select %97, %98, %99 : vector<32x1xi1>, vector<32x1xf32>
    %101 = vector.broadcast %100 : vector<32x1xf32> to vector<32x128xf32>
    %102 = arith.mulf %95, %101 : vector<32x128xf32>
    %c384 = arith.constant 384 : index
    %c0_41 = arith.constant 0 : index
    %103 = vector.load %arg5[%c384, %c0_41] : memref<640x64xf32, #tpu.memory_space<vmem>>, vector<128x64xf32>
    %cst_42 = arith.constant dense<0.000000e+00> : vector<32x64xf32>
    %104 = tpu.matmul %102, %103, %cst_42 {dimension_numbers = #tpu.dot_dimension_numbers<[1], [0], [0], [1], [0, 0, 1, 1], [], []>} : vector<32x128xf32>, vector<128x64xf32>, vector<32x64xf32> -> vector<32x64xf32>
    %105 = arith.addf %94, %104 : vector<32x64xf32>
    %c30_i32 = arith.constant 30 : i32
    %106 = tpu.dynamic_rotate %70 by %c30_i32 dim 0 : vector<32x128xf32>, i32 -> vector<32x128xf32>
    %cst_43 = arith.constant 1.400000e+01 : f32
    %107 = vector.broadcast %cst_43 : f32 to vector<32x1xf32>
    %108 = arith.cmpf olt, %2, %107 : vector<32x1xf32>
    %cst_44 = arith.constant 1.000000e+00 : f32
    %cst_45 = arith.constant 0.000000e+00 : f32
    %109 = vector.broadcast %cst_44 : f32 to vector<32x1xf32>
    %110 = vector.broadcast %cst_45 : f32 to vector<32x1xf32>
    %111 = arith.select %108, %109, %110 : vector<32x1xi1>, vector<32x1xf32>
    %112 = vector.broadcast %111 : vector<32x1xf32> to vector<32x128xf32>
    %113 = arith.mulf %106, %112 : vector<32x128xf32>
    %c512 = arith.constant 512 : index
    %c0_46 = arith.constant 0 : index
    %114 = vector.load %arg5[%c512, %c0_46] : memref<640x64xf32, #tpu.memory_space<vmem>>, vector<128x64xf32>
    %cst_47 = arith.constant dense<0.000000e+00> : vector<32x64xf32>
    %115 = tpu.matmul %113, %114, %cst_47 {dimension_numbers = #tpu.dot_dimension_numbers<[1], [0], [0], [1], [0, 0, 1, 1], [], []>} : vector<32x128xf32>, vector<128x64xf32>, vector<32x64xf32> -> vector<32x64xf32>
    %116 = arith.addf %105, %115 : vector<32x64xf32>
    %c0_48 = arith.constant 0 : index
    %c0_49 = arith.constant 0 : index
    %117 = vector.load %arg6[%c0_48, %c0_49] : memref<9x64xf32, #tpu.memory_space<vmem>>, vector<1x64xf32>
    %118 = vector.broadcast %117 : vector<1x64xf32> to vector<32x64xf32>
    %119 = arith.addf %116, %118 : vector<32x64xf32>
    %cst_50 = arith.constant dense<0.000000e+00> : vector<64xf32>
    %120 = vector.multi_reduction <add>, %119, %cst_50 [0] : vector<32x64xf32> to vector<64xf32>
    %121 = vector.shape_cast %120 : vector<64xf32> to vector<1x64xf32>
    %cst_51 = arith.constant 3.125000e-02 : f32
    %122 = vector.broadcast %cst_51 : f32 to vector<1x64xf32>
    %123 = arith.mulf %121, %122 : vector<1x64xf32>
    %124 = vector.broadcast %123 : vector<1x64xf32> to vector<32x64xf32>
    %125 = arith.subf %119, %124 : vector<32x64xf32>
    %126 = arith.mulf %125, %125 : vector<32x64xf32>
    %cst_52 = arith.constant dense<0.000000e+00> : vector<64xf32>
    %127 = vector.multi_reduction <add>, %126, %cst_52 [0] : vector<32x64xf32> to vector<64xf32>
    %128 = vector.shape_cast %127 : vector<64xf32> to vector<1x64xf32>
    %cst_53 = arith.constant 3.125000e-02 : f32
    %129 = vector.broadcast %cst_53 : f32 to vector<1x64xf32>
    %130 = arith.mulf %128, %129 : vector<1x64xf32>
    %131 = vector.broadcast %123 : vector<1x64xf32> to vector<32x64xf32>
    %132 = arith.subf %119, %131 : vector<32x64xf32>
    %cst_54 = arith.constant 9.99999974E-6 : f32
    %133 = vector.broadcast %cst_54 : f32 to vector<1x64xf32>
    %134 = arith.addf %130, %133 : vector<1x64xf32>
    %135 = math.rsqrt %134 : vector<1x64xf32>
    %136 = vector.broadcast %135 : vector<1x64xf32> to vector<32x64xf32>
    %137 = arith.mulf %132, %136 : vector<32x64xf32>
    %c1_55 = arith.constant 1 : index
    %c0_56 = arith.constant 0 : index
    %138 = vector.load %arg6[%c1_55, %c0_56] : memref<9x64xf32, #tpu.memory_space<vmem>>, vector<1x64xf32>
    %139 = vector.broadcast %138 : vector<1x64xf32> to vector<32x64xf32>
    %140 = arith.mulf %137, %139 : vector<32x64xf32>
    %c2_57 = arith.constant 2 : index
    %c0_58 = arith.constant 0 : index
    %141 = vector.load %arg6[%c2_57, %c0_58] : memref<9x64xf32, #tpu.memory_space<vmem>>, vector<1x64xf32>
    %142 = vector.broadcast %141 : vector<1x64xf32> to vector<32x64xf32>
    %143 = arith.addf %140, %142 : vector<32x64xf32>
    %cst_59 = arith.constant 0.000000e+00 : f32
    %144 = vector.broadcast %cst_59 : f32 to vector<32x64xf32>
    %145 = arith.maximumf %143, %144 : vector<32x64xf32>
    %c5 = arith.constant 5 : index
    %c0_60 = arith.constant 0 : index
    %146 = vector.load %arg6[%c5, %c0_60] : memref<9x64xf32, #tpu.memory_space<vmem>>, vector<1x64xf32>
    %147 = vector.broadcast %146 : vector<1x64xf32> to vector<32x64xf32>
    %148 = arith.mulf %145, %147 : vector<32x64xf32>
    %c2_i32_61 = arith.constant 2 : i32
    %149 = tpu.dynamic_rotate %145 by %c2_i32_61 dim 0 : vector<32x64xf32>, i32 -> vector<32x64xf32>
    %cst_62 = arith.constant 2.000000e+00 : f32
    %150 = vector.broadcast %cst_62 : f32 to vector<32x1xf32>
    %151 = arith.cmpf oge, %2, %150 : vector<32x1xf32>
    %cst_63 = arith.constant 1.000000e+00 : f32
    %cst_64 = arith.constant 0.000000e+00 : f32
    %152 = vector.broadcast %cst_63 : f32 to vector<32x1xf32>
    %153 = vector.broadcast %cst_64 : f32 to vector<32x1xf32>
    %154 = arith.select %151, %152, %153 : vector<32x1xi1>, vector<32x1xf32>
    %155 = vector.broadcast %154 : vector<32x1xf32> to vector<32x64xf32>
    %156 = arith.mulf %149, %155 : vector<32x64xf32>
    %c3_65 = arith.constant 3 : index
    %c0_66 = arith.constant 0 : index
    %157 = vector.load %arg6[%c3_65, %c0_66] : memref<9x64xf32, #tpu.memory_space<vmem>>, vector<1x64xf32>
    %158 = vector.broadcast %157 : vector<1x64xf32> to vector<32x64xf32>
    %159 = arith.mulf %156, %158 : vector<32x64xf32>
    %160 = arith.addf %148, %159 : vector<32x64xf32>
    %c1_i32_67 = arith.constant 1 : i32
    %161 = tpu.dynamic_rotate %145 by %c1_i32_67 dim 0 : vector<32x64xf32>, i32 -> vector<32x64xf32>
    %cst_68 = arith.constant 1.000000e+00 : f32
    %162 = vector.broadcast %cst_68 : f32 to vector<32x1xf32>
    %163 = arith.cmpf oge, %2, %162 : vector<32x1xf32>
    %cst_69 = arith.constant 1.000000e+00 : f32
    %cst_70 = arith.constant 0.000000e+00 : f32
    %164 = vector.broadcast %cst_69 : f32 to vector<32x1xf32>
    %165 = vector.broadcast %cst_70 : f32 to vector<32x1xf32>
    %166 = arith.select %163, %164, %165 : vector<32x1xi1>, vector<32x1xf32>
    %167 = vector.broadcast %166 : vector<32x1xf32> to vector<32x64xf32>
    %168 = arith.mulf %161, %167 : vector<32x64xf32>
    %c4 = arith.constant 4 : index
    %c0_71 = arith.constant 0 : index
    %169 = vector.load %arg6[%c4, %c0_71] : memref<9x64xf32, #tpu.memory_space<vmem>>, vector<1x64xf32>
    %170 = vector.broadcast %169 : vector<1x64xf32> to vector<32x64xf32>
    %171 = arith.mulf %168, %170 : vector<32x64xf32>
    %172 = arith.addf %160, %171 : vector<32x64xf32>
    %c31_i32_72 = arith.constant 31 : i32
    %173 = tpu.dynamic_rotate %145 by %c31_i32_72 dim 0 : vector<32x64xf32>, i32 -> vector<32x64xf32>
    %cst_73 = arith.constant 1.500000e+01 : f32
    %174 = vector.broadcast %cst_73 : f32 to vector<32x1xf32>
    %175 = arith.cmpf olt, %2, %174 : vector<32x1xf32>
    %cst_74 = arith.constant 1.000000e+00 : f32
    %cst_75 = arith.constant 0.000000e+00 : f32
    %176 = vector.broadcast %cst_74 : f32 to vector<32x1xf32>
    %177 = vector.broadcast %cst_75 : f32 to vector<32x1xf32>
    %178 = arith.select %175, %176, %177 : vector<32x1xi1>, vector<32x1xf32>
    %179 = vector.broadcast %178 : vector<32x1xf32> to vector<32x64xf32>
    %180 = arith.mulf %173, %179 : vector<32x64xf32>
    %c6 = arith.constant 6 : index
    %c0_76 = arith.constant 0 : index
    %181 = vector.load %arg6[%c6, %c0_76] : memref<9x64xf32, #tpu.memory_space<vmem>>, vector<1x64xf32>
    %182 = vector.broadcast %181 : vector<1x64xf32> to vector<32x64xf32>
    %183 = arith.mulf %180, %182 : vector<32x64xf32>
    %184 = arith.addf %172, %183 : vector<32x64xf32>
    %c30_i32_77 = arith.constant 30 : i32
    %185 = tpu.dynamic_rotate %145 by %c30_i32_77 dim 0 : vector<32x64xf32>, i32 -> vector<32x64xf32>
    %cst_78 = arith.constant 1.400000e+01 : f32
    %186 = vector.broadcast %cst_78 : f32 to vector<32x1xf32>
    %187 = arith.cmpf olt, %2, %186 : vector<32x1xf32>
    %cst_79 = arith.constant 1.000000e+00 : f32
    %cst_80 = arith.constant 0.000000e+00 : f32
    %188 = vector.broadcast %cst_79 : f32 to vector<32x1xf32>
    %189 = vector.broadcast %cst_80 : f32 to vector<32x1xf32>
    %190 = arith.select %187, %188, %189 : vector<32x1xi1>, vector<32x1xf32>
    %191 = vector.broadcast %190 : vector<32x1xf32> to vector<32x64xf32>
    %192 = arith.mulf %185, %191 : vector<32x64xf32>
    %c7 = arith.constant 7 : index
    %c0_81 = arith.constant 0 : index
    %193 = vector.load %arg6[%c7, %c0_81] : memref<9x64xf32, #tpu.memory_space<vmem>>, vector<1x64xf32>
    %194 = vector.broadcast %193 : vector<1x64xf32> to vector<32x64xf32>
    %195 = arith.mulf %192, %194 : vector<32x64xf32>
    %196 = arith.addf %184, %195 : vector<32x64xf32>
    %cst_82 = arith.constant dense<0.000000e+00> : vector<32xf32>
    %197 = vector.multi_reduction <add>, %196, %cst_82 [1] : vector<32x64xf32> to vector<32xf32>
    %198 = vector.shape_cast %197 : vector<32xf32> to vector<32x1xf32>
    %c8 = arith.constant 8 : index
    %c0_83 = arith.constant 0 : index
    %199 = vector.load %arg6[%c8, %c0_83] : memref<9x64xf32, #tpu.memory_space<vmem>>, vector<1x1xf32>
    %200 = vector.broadcast %199 : vector<1x1xf32> to vector<32x1xf32>
    %201 = arith.addf %198, %200 : vector<32x1xf32>
    %cst_84 = arith.constant 2.000000e+01 : f32
    %202 = vector.broadcast %cst_84 : f32 to vector<32x1xf32>
    %203 = arith.cmpf ogt, %201, %202 : vector<32x1xf32>
    %cst_85 = arith.constant 2.000000e+01 : f32
    %204 = vector.broadcast %cst_85 : f32 to vector<32x1xf32>
    %205 = arith.minimumf %201, %204 : vector<32x1xf32>
    %206 = math.exp %205 : vector<32x1xf32>
    %cst_86 = arith.constant 1.000000e+00 : f32
    %207 = vector.broadcast %cst_86 : f32 to vector<32x1xf32>
    %208 = arith.addf %207, %206 : vector<32x1xf32>
    %209 = math.log %208 : vector<32x1xf32>
    %210 = arith.select %203, %201, %209 : vector<32x1xi1>, vector<32x1xf32>
    %c0_87 = arith.constant 0 : index
    %c0_88 = arith.constant 0 : index
    %211 = vector.load %arg7[%c0_87, %c0_88] : memref<32x1xf32, #tpu.memory_space<vmem>>, vector<32x1xf32>
    tpu.vector_store %arg7[%c0_87, %c0_88], %210 {strides = array<i32>} : memref<32x1xf32, #tpu.memory_space<vmem>>, vector<32x1xf32>,
    return
  }
  func.func @transform_0(%arg0: i32) -> (i32, i32) {
    %c0_i32 = arith.constant 0 : i32
    %c0_i32_0 = arith.constant 0 : i32
    %c0_i32_1 = arith.constant 0 : i32
    return %c0_i32, %c0_i32_0 : i32, i32
  }
  func.func @transform_1(%arg0: i32) -> (i32, i32) {
    %c0_i32 = arith.constant 0 : i32
    %c0_i32_0 = arith.constant 0 : i32
    %c0_i32_1 = arith.constant 0 : i32
    return %c0_i32, %c0_i32_0 : i32, i32
  }
  func.func @transform_2(%arg0: i32) -> (i32, i32) {
    %c0_i32 = arith.constant 0 : i32
    %c0_i32_0 = arith.constant 0 : i32
    %c0_i32_1 = arith.constant 0 : i32
    return %c0_i32, %c0_i32_0 : i32, i32
  }
  func.func @transform_3(%arg0: i32) -> (i32, i32) {
    %c0_i32 = arith.constant 0 : i32
    %c0_i32_0 = arith.constant 0 : i32
    %c0_i32_1 = arith.constant 0 : i32
    return %c0_i32, %c0_i32_0 : i32, i32
  }
  func.func @transform_4(%arg0: i32) -> (i32, i32) {
    %c0_i32 = arith.constant 0 : i32
    %c0_i32_0 = arith.constant 0 : i32
    %c0_i32_1 = arith.constant 0 : i32
    return %c0_i32, %c0_i32_0 : i32, i32
  }
  func.func @transform_5(%arg0: i32) -> (i32, i32) {
    %c0_i32 = arith.constant 0 : i32
    %c0_i32_0 = arith.constant 0 : i32
    %c0_i32_1 = arith.constant 0 : i32
    return %c0_i32, %c0_i32_0 : i32, i32
  }
  func.func @transform_6(%arg0: i32) -> (i32, i32) {
    %c0_i32 = arith.constant 0 : i32
    %c0_i32_0 = arith.constant 0 : i32
    %c0_i32_1 = arith.constant 0 : i32
    return %c0_i32, %c0_i32_0 : i32, i32
  }
}

</mosaic_0001>

<llo_original>
// kernel: tpu_custom_call.1
$region0: #{tpu_custom_call.1}
  #allocation0 [shape = 'u32[]', space=smem, size = 0x4, offset = 0x4, fixed_abs, tag = 'smem constant byte address 0x4 - core index']
  #allocation1 [shape = 'u32[144,128]{1,0:T(1,128)}', space=vmem, size = 0x12000, scoped, tag = 'internal scratch']
  %s0 = inlined_call_operand.vmem [shape: f32[33,2], index: 0, kind: input, shape index: {}]
  %s1 = inlined_call_operand.vmem [shape: f32[64,33], index: 1, kind: input, shape index: {}]
  %s2 = inlined_call_operand.vmem [shape: f32[12,256], index: 2, kind: input, shape index: {}]
  %s3 = inlined_call_operand.vmem [shape: f32[4,128], index: 3, kind: input, shape index: {}]
  %s4 = inlined_call_operand.vmem [shape: f32[640,64], index: 4, kind: input, shape index: {}]
  %s5 = inlined_call_operand.vmem [shape: f32[9,64], index: 5, kind: input, shape index: {}]
  %s6 = inlined_call_operand.vmem [shape: f32[32,1], index: 6, kind: output, shape index: {}]
  %s7 = sld [smem:[#allocation0]]
  $region34: #{tpu_custom_call.1} parent=0
    _
  %s9 = ssub.s32 1, %s7
  %s10 = scalar_select 0, %s9, %s7
  // Predicated region
  $region2: #{tpu_custom_call.1} parent=0 // pred_check
    _
  $region3: #{tpu_custom_call.1} parent=0 // pred_check_branch
    %12 = sbr.rel (0) target = $region5
  $region4: #{tpu_custom_call.1} parent=0 // pred_region
    _
  $region5: #{tpu_custom_call.1} parent=0 // pred_fallthru
    _
  // Predicated region
  $region6: #{tpu_custom_call.1} parent=0 // pred_check
    _
  $region7: #{tpu_custom_call.1} parent=0 // pred_check_branch
    %14 = sbr.rel (0) target = $region9
  $region8: #{tpu_custom_call.1} parent=0 // pred_region
    _
  $region9: #{tpu_custom_call.1} parent=0 // pred_fallthru
    _
  // Predicated region
  $region10: #{tpu_custom_call.1} parent=0 // pred_check
    _
  $region11: #{tpu_custom_call.1} parent=0 // pred_check_branch
    %16 = sbr.rel (0) target = $region13
  $region12: #{tpu_custom_call.1} parent=0 // pred_region
    _
  $region13: #{tpu_custom_call.1} parent=0 // pred_fallthru
    _
  // Predicated region
  $region14: #{tpu_custom_call.1} parent=0 // pred_check
    _
  $region15: #{tpu_custom_call.1} parent=0 // pred_check_branch
    %18 = sbr.rel (0) target = $region17
  $region16: #{tpu_custom_call.1} parent=0 // pred_region
    _
  $region17: #{tpu_custom_call.1} parent=0 // pred_fallthru
    _
  // Predicated region
  $region18: #{tpu_custom_call.1} parent=0 // pred_check
    _
  $region19: #{tpu_custom_call.1} parent=0 // pred_check_branch
    %20 = sbr.rel (0) target = $region21
  $region20: #{tpu_custom_call.1} parent=0 // pred_region
    _
  $region21: #{tpu_custom_call.1} parent=0 // pred_fallthru
    _
  // Predicated region
  $region22: #{tpu_custom_call.1} parent=0 // pred_check
    _
  $region23: #{tpu_custom_call.1} parent=0 // pred_check_branch
    %22 = sbr.rel (0) target = $region25
  $region24: #{tpu_custom_call.1} parent=0 // pred_region
    _
  $region25: #{tpu_custom_call.1} parent=0 // pred_fallthru
    _
  %v23 = vlaneseq
  %v24 = vshrl.u32 %v23, 7
  %v25 = vadd.s32 %v24, 8
  %v26 = vcvt.s32.f32 %v24
  %v27 = vcvt.s32.f32 %v25
  %v28 = vld [vmem:[%s1] sm:$0xff]
  %v29 = vld [vmem:[%s1 + $0x8] sm:$0xff]
  %v30 = vld [vmem:[%s1 + $0x10] sm:$0xff]
  %v31 = vld [vmem:[%s1 + $0x18] sm:$0xff]
  %v32 = vld [vmem:[%s1 + $0x20] sm:$0xff]
  %v33 = vld [vmem:[%s1 + $0x28] sm:$0xff]
  %v34 = vld [vmem:[%s1 + $0x30] sm:$0xff]
  %v35 = vld [vmem:[%s1 + $0x38] sm:$0xff]
  %v36 = vld [vmem:[%s0] sm:$0xff]
  %v37 = vld [vmem:[%s0 + $0x8] sm:$0xff]
  %v38 = vld [vmem:[%s0 + $0x10] sm:$0xff]
  %v39 = vld [vmem:[%s0 + $0x18] sm:$0xff]
  %v40 = vld [vmem:[%s0 + $0x20] sm:$0x1]
  %vm41 = vcmask 269312
  %v43 = vsel %vm41, %v28, 0
  %v46 = vsel %vm41, %v29, 0
  %v49 = vsel %vm41, %v30, 0
  %v52 = vsel %vm41, %v31, 0
  %v55 = vsel %vm41, %v32, 0
  %v58 = vsel %vm41, %v33, 0
  %v61 = vsel %vm41, %v34, 0
  %v64 = vsel %vm41, %v35, 0
  %vm66 = vcmask 1040384
  %v68 = vsel %vm66, %v40, 0
  %70 = vmatprep.subr.mxu0 0.0
  %71 = vmatpush1.msra.mxu0 0.0
  %72 = vmatprep.subr.mxu0 0.0
  %73 = vmatpush1.msra.mxu0 0.0
  %74 = vmatprep.subr.mxu0 0.0
  %75 = vmatpush1.msra.mxu0 0.0
  %76 = vmatprep.subr.mxu0 0.0
  %77 = vmatpush1.msra.mxu0 0.0
  %78 = vmatprep.subr.mxu0 0.0
  %79 = vmatpush1.msra.mxu0 0.0
  %80 = vmatprep.subr.mxu0 0.0
  %81 = vmatpush1.msra.mxu0 0.0
  %82 = vmatprep.subr.mxu0 0.0
  %83 = vmatpush1.msra.mxu0 0.0
  %84 = vmatprep.subr.mxu0 0.0
  %85 = vmatpush1.msra.mxu0 0.0
  %86 = vmatprep.subr.mxu0 0.0
  %87 = vmatpush1.msra.mxu0 0.0
  %88 = vmatprep.subr.mxu0 0.0
  %89 = vmatpush1.msra.mxu0 0.0
  %90 = vmatprep.subr.mxu0 0.0
  %91 = vmatpush1.msra.mxu0 0.0
  %92 = vmatprep.subr.mxu0 0.0
  %93 = vmatpush1.msra.mxu0 %v68
  %94 = vmatprep.subr.mxu0 0.0
  %95 = vmatpush1.msra.mxu0 %v39
  %96 = vmatprep.subr.mxu0 0.0
  %97 = vmatpush1.msra.mxu0 %v38
  %98 = vmatprep.subr.mxu0 0.0
  %99 = vmatpush1.msra.mxu0 %v37
  %100 = vmatprep.subr.mxu0 0.0
  %101 = vmatpush1.msra.mxu0 %v36
  %102 = vmatprep.subr.mxu0 0.0
  %103 = vmatpush2.msra.mxu0 0.0
  %104 = vmatprep.subr.mxu0 0.0
  %105 = vmatpush2.msra.mxu0 0.0
  %106 = vmatprep.subr.mxu0 0.0
  %107 = vmatpush2.msra.mxu0 0.0
  %108 = vmatprep.subr.mxu0 0.0
  %109 = vmatpush2.msra.mxu0 0.0
  %110 = vmatprep.subr.mxu0 0.0
  %111 = vmatpush2.msra.mxu0 0.0
  %112 = vmatprep.subr.mxu0 0.0
  %113 = vmatpush2.msra.mxu0 0.0
  %114 = vmatprep.subr.mxu0 0.0
  %115 = vmatpush2.msra.mxu0 0.0
  %116 = vmatprep.subr.mxu0 0.0
  %117 = vmatpush2.msra.mxu0 0.0
  %118 = vmatprep.subr.mxu0 0.0
  %119 = vmatpush2.msra.mxu0 0.0
  %120 = vmatprep.subr.mxu0 0.0
  %121 = vmatpush2.msra.mxu0 0.0
  %122 = vmatprep.subr.mxu0 0.0
  %123 = vmatpush2.msra.mxu0 0.0
  %124 = vmatprep.subr.mxu0 0.0
  %125 = vmatpush2.msra.mxu0 0.0
  %126 = vmatprep.subr.mxu0 0.0
  %127 = vmatpush2.msra.mxu0 0.0
  %128 = vmatprep.subr.mxu0 0.0
  %129 = vmatpush2.msra.mxu0 0.0
  %130 = vmatprep.subr.mxu0 0.0
  %131 = vmatpush2.msra.mxu0 0.0
  %132 = vmatprep.subr.mxu0 0.0
  %133 = vmatpush2.msra.mxu0 0.0
  %134 = vmatprep.mubr.f32.mxu0 0.0
  %135 = vmatmul.mubr.f32.gmra.mxu0 %v43
  %v136 = vpop.f32.mrf.mxu0
  %v137 = vadd.f32 0.0, %v136
  %v138 = vpop.f32.mrf.mxu0
  %139 = vmatprep.mubr.f32.mxu0 0.0
  %140 = vmatmul.mubr.f32.gmra.mxu0 %v46
  %v141 = vpop.f32.mrf.mxu0
  %v142 = vadd.f32 0.0, %v141
  %v143 = vpop.f32.mrf.mxu0
  %144 = vmatprep.mubr.f32.mxu0 0.0
  %145 = vmatmul.mubr.f32.gmra.mxu0 %v49
  %v146 = vpop.f32.mrf.mxu0
  %v147 = vadd.f32 0.0, %v146
  %v148 = vpop.f32.mrf.mxu0
  %149 = vmatprep.mubr.f32.mxu0 0.0
  %150 = vmatmul.mubr.f32.gmra.mxu0 %v52
  %v151 = vpop.f32.mrf.mxu0
  %v152 = vadd.f32 0.0, %v151
  %v153 = vpop.f32.mrf.mxu0
  %154 = vmatprep.mubr.f32.mxu0 0.0
  %155 = vmatmul.mubr.f32.gmra.mxu0 %v55
  %v156 = vpop.f32.mrf.mxu0
  %v157 = vadd.f32 0.0, %v156
  %v158 = vpop.f32.mrf.mxu0
  %159 = vmatprep.mubr.f32.mxu0 0.0
  %160 = vmatmul.mubr.f32.gmra.mxu0 %v58
  %v161 = vpop.f32.mrf.mxu0
  %v162 = vadd.f32 0.0, %v161
  %v163 = vpop.f32.mrf.mxu0
  %164 = vmatprep.mubr.f32.mxu0 0.0
  %165 = vmatmul.mubr.f32.gmra.mxu0 %v61
  %v166 = vpop.f32.mrf.mxu0
  %v167 = vadd.f32 0.0, %v166
  %v168 = vpop.f32.mrf.mxu0
  %169 = vmatprep.mubr.f32.mxu0 0.0
  %170 = vmatmul.mubr.f32.gmra.mxu0 %v64
  %v171 = vpop.f32.mrf.mxu0
  %v172 = vadd.f32 0.0, %v171
  %v173 = vpop.f32.mrf.mxu0
  %174 = vdwg.mxu0
  %177 = vrot.lane.b32.xlu0 %v147, 1
  %v178 = vpop.permute.xlu0 %177
  %179 = vrot.lane.b32.xlu0 %v152, 1
  %v180 = vpop.permute.xlu0 %179
  %185 = vrot.lane.b32.xlu0 %v157, 2
  %v186 = vpop.permute.xlu0 %185
  %187 = vrot.lane.b32.xlu0 %v162, 2
  %v188 = vpop.permute.xlu0 %187
  %193 = vrot.lane.b32.xlu0 %v167, 3
  %v194 = vpop.permute.xlu0 %193
  %195 = vrot.lane.b32.xlu0 %v172, 3
  %v196 = vpop.permute.xlu0 %195
  %vm199 = vcmask 7168
  %v200 = vsel %vm199, %v137, %v178
  %v201 = vsel %vm199, %v142, %v180
  %vm202 = vcmask 15360
  %v203 = vsel %vm202, %v200, %v186
  %v204 = vsel %vm202, %v201, %v188
  %vm205 = vcmask 23552
  %v206 = vsel %vm205, %v203, %v194
  %v207 = vsel %vm205, %v204, %v196
  %210 = vrot.lane.b32.xlu0 %v137, 127
  %v211 = vpop.permute.xlu0 %210
  %212 = vrot.lane.b32.xlu0 %v142, 127
  %v213 = vpop.permute.xlu0 %212
  %216 = vrot.lane.b32.xlu0 %v157, 1
  %v217 = vpop.permute.xlu0 %216
  %218 = vrot.lane.b32.xlu0 %v162, 1
  %v219 = vpop.permute.xlu0 %218
  %222 = vrot.lane.b32.xlu0 %v167, 2
  %v223 = vpop.permute.xlu0 %222
  %224 = vrot.lane.b32.xlu0 %v172, 2
  %v225 = vpop.permute.xlu0 %224
  %v228 = vsel %vm199, %v211, %v147
  %v229 = vsel %vm199, %v213, %v152
  %v230 = vsel %vm202, %v228, %v217
  %v231 = vsel %vm202, %v229, %v219
  %v232 = vsel %vm205, %v230, %v223
  %v233 = vsel %vm205, %v231, %v225
  %v234 = vrot.slane %v206, 7
  %v235 = vrot.slane %v207, 7
  %v236 = vrot.slane %v232, 7
  %v237 = vrot.slane %v233, 7
  %vm238 = vcmp.lt.s32.totalorder %v24, 1
  %v239 = vsel %vm238, %v236, %v237
  %v240 = vsel %vm238, %v235, %v236
  %v241 = vsel %vm238, %v234, %v235
  %v242 = vsel %vm238, %v237, %v234
  %vm243 = vcmp.ge.f32.partialorder %v26, 1.0
  %vm244 = vcmp.ge.f32.partialorder %v27, 1.0
  %v245 = vsel %vm243, 1.0, 0.0
  %v246 = vsel %vm244, 1.0, 0.0
  %248 = vset.pattern.permute.xlu0 0
  %249 = vperm.xlu0 %248, %v245
  %v250 = vpop.permute.xlu0 %249
  %253 = vset.pattern.permute.xlu0 0
  %254 = vperm.xlu0 %253, %v246
  %v255 = vpop.permute.xlu0 %254
  %v257 = vmul.f32 %v242, %v250
  %v258 = vmul.f32 %v241, %v255
  %v259 = vmul.f32 %v240, %v250
  %v260 = vmul.f32 %v239, %v255
  %v261 = vrot.slane %v206, 1
  %v262 = vrot.slane %v207, 1
  %v263 = vrot.slane %v232, 1
  %v264 = vrot.slane %v233, 1
  %vm265 = vcmp.lt.s32.totalorder %v24, 7
  %v266 = vsel %vm265, %v263, %v264
  %v267 = vsel %vm265, %v262, %v263
  %v268 = vsel %vm265, %v261, %v262
  %v269 = vsel %vm265, %v264, %v261
  %vm270 = vcmp.lt.f32.partialorder %v26, 15.0
  %vm271 = vcmp.lt.f32.partialorder %v27, 15.0
  %v272 = vsel %vm270, 1.0, 0.0
  %v273 = vsel %vm271, 1.0, 0.0
  %275 = vset.pattern.permute.xlu0 0
  %276 = vperm.xlu0 %275, %v272
  %v277 = vpop.permute.xlu0 %276
  %280 = vset.pattern.permute.xlu0 0
  %281 = vperm.xlu0 %280, %v273
  %v282 = vpop.permute.xlu0 %281
  %v284 = vmul.f32 %v268, %v277
  %v285 = vmul.f32 %v267, %v282
  %v286 = vmul.f32 %v266, %v277
  %v287 = vmul.f32 %v269, %v282
  %292 = vrot.lane.b32.xlu0 %v206, 4
  %v293 = vpop.permute.xlu0 %292
  %294 = vrot.lane.b32.xlu0 %v207, 4
  %v295 = vpop.permute.xlu0 %294
  %296 = vrot.lane.b32.xlu0 %v232, 4
  %v297 = vpop.permute.xlu0 %296
  %298 = vrot.lane.b32.xlu0 %v233, 4
  %v299 = vpop.permute.xlu0 %298
  %308 = vrot.lane.b32.xlu0 %v284, 8
  %v309 = vpop.permute.xlu0 %308
  %310 = vrot.lane.b32.xlu0 %v285, 8
  %v311 = vpop.permute.xlu0 %310
  %312 = vrot.lane.b32.xlu0 %v286, 8
  %v313 = vpop.permute.xlu0 %312
  %314 = vrot.lane.b32.xlu0 %v287, 8
  %v315 = vpop.permute.xlu0 %314
  %vm320 = vcmask 31744
  %v321 = vsel %vm320, %v257, %v293
  %v322 = vsel %vm320, %v258, %v295
  %v323 = vsel %vm320, %v259, %v297
  %v324 = vsel %vm320, %v260, %v299
  %vm325 = vcmask 64512
  %v326 = vsel %vm325, %v321, %v309
  %v327 = vsel %vm325, %v322, %v311
  %v328 = vsel %vm325, %v323, %v313
  %v329 = vsel %vm325, %v324, %v315
  %v330 = vld [vmem:[%s2] sm:$0xff]
  %v331 = vld [vmem:[%s2 + $0x8] sm:$0xff]
  %v332 = vld [vmem:[%s2 + $0x10] sm:$0xf]
  %v333 = vld [vmem:[%s2 + $0x18] sm:$0xf]
  %vm334 = vcmask 97280
  %v336 = vsel %vm334, %v326, 0
  %v339 = vsel %vm334, %v327, 0
  %v342 = vsel %vm334, %v328, 0
  %v345 = vsel %vm334, %v329, 0
  %vm347 = vcmask 1043456
  %v349 = vsel %vm347, %v332, 0
  %v352 = vsel %vm347, %v333, 0
  %354 = vmatprep.subr.mxu0 0.0
  %355 = vmatpush1.msra.mxu0 0.0
  %356 = vmatprep.subr.mxu0 0.0
  %357 = vmatpush1.msra.mxu0 0.0
  %358 = vmatprep.subr.mxu0 0.0
  %359 = vmatpush1.msra.mxu0 0.0
  %360 = vmatprep.subr.mxu0 0.0
  %361 = vmatpush1.msra.mxu0 0.0
  %362 = vmatprep.subr.mxu0 0.0
  %363 = vmatpush1.msra.mxu0 0.0
  %364 = vmatprep.subr.mxu0 0.0
  %365 = vmatpush1.msra.mxu0 0.0
  %366 = vmatprep.subr.mxu0 0.0
  %367 = vmatpush1.msra.mxu0 0.0
  %368 = vmatprep.subr.mxu0 0.0
  %369 = vmatpush1.msra.mxu0 0.0
  %370 = vmatprep.subr.mxu0 0.0
  %371 = vmatpush1.msra.mxu0 0.0
  %372 = vmatprep.subr.mxu0 0.0
  %373 = vmatpush1.msra.mxu0 0.0
  %374 = vmatprep.subr.mxu0 0.0
  %375 = vmatpush1.msra.mxu0 0.0
  %376 = vmatprep.subr.mxu0 0.0
  %377 = vmatpush1.msra.mxu0 0.0
  %378 = vmatprep.subr.mxu0 0.0
  %379 = vmatpush1.msra.mxu0 0.0
  %380 = vmatprep.subr.mxu0 0.0
  %381 = vmatpush1.msra.mxu0 0.0
  %382 = vmatprep.subr.mxu0 %v352
  %383 = vmatpush1.msra.mxu0 %v349
  %384 = vmatprep.subr.mxu0 %v331
  %385 = vmatpush1.msra.mxu0 %v330
  %386 = vmatprep.subr.mxu0 0.0
  %387 = vmatpush2.msra.mxu0 0.0
  %388 = vmatprep.subr.mxu0 0.0
  %389 = vmatpush2.msra.mxu0 0.0
  %390 = vmatprep.subr.mxu0 0.0
  %391 = vmatpush2.msra.mxu0 0.0
  %392 = vmatprep.subr.mxu0 0.0
  %393 = vmatpush2.msra.mxu0 0.0
  %394 = vmatprep.subr.mxu0 0.0
  %395 = vmatpush2.msra.mxu0 0.0
  %396 = vmatprep.subr.mxu0 0.0
  %397 = vmatpush2.msra.mxu0 0.0
  %398 = vmatprep.subr.mxu0 0.0
  %399 = vmatpush2.msra.mxu0 0.0
  %400 = vmatprep.subr.mxu0 0.0
  %401 = vmatpush2.msra.mxu0 0.0
  %402 = vmatprep.subr.mxu0 0.0
  %403 = vmatpush2.msra.mxu0 0.0
  %404 = vmatprep.subr.mxu0 0.0
  %405 = vmatpush2.msra.mxu0 0.0
  %406 = vmatprep.subr.mxu0 0.0
  %407 = vmatpush2.msra.mxu0 0.0
  %408 = vmatprep.subr.mxu0 0.0
  %409 = vmatpush2.msra.mxu0 0.0
  %410 = vmatprep.subr.mxu0 0.0
  %411 = vmatpush2.msra.mxu0 0.0
  %412 = vmatprep.subr.mxu0 0.0
  %413 = vmatpush2.msra.mxu0 0.0
  %414 = vmatprep.subr.mxu0 0.0
  %415 = vmatpush2.msra.mxu0 0.0
  %416 = vmatprep.subr.mxu0 0.0
  %417 = vmatpush2.msra.mxu0 0.0
  %418 = vmatprep.mubr.f32.mxu0 0.0
  %419 = vmatmul.mubr.f32.gmra.mxu0 %v336
  %v420 = vpop.f32.mrf.mxu0
  %v421 = vadd.f32 0.0, %v420
  %v422 = vpop.f32.mrf.mxu0
  %v423 = vadd.f32 0.0, %v422
  %424 = vmatprep.mubr.f32.mxu0 0.0
  %425 = vmatmul.mubr.f32.gmra.mxu0 %v339
  %v426 = vpop.f32.mrf.mxu0
  %v427 = vadd.f32 0.0, %v426
  %v428 = vpop.f32.mrf.mxu0
  %v429 = vadd.f32 0.0, %v428
  %430 = vmatprep.mubr.f32.mxu0 0.0
  %431 = vmatmul.mubr.f32.gmra.mxu0 %v342
  %v432 = vpop.f32.mrf.mxu0
  %v433 = vadd.f32 0.0, %v432
  %v434 = vpop.f32.mrf.mxu0
  %v435 = vadd.f32 0.0, %v434
  %436 = vmatprep.mubr.f32.mxu0 0.0
  %437 = vmatmul.mubr.f32.gmra.mxu0 %v345
  %v438 = vpop.f32.mrf.mxu0
  %v439 = vadd.f32 0.0, %v438
  %v440 = vpop.f32.mrf.mxu0
  %v441 = vadd.f32 0.0, %v440
  %442 = vdwg.mxu0
  %v443 = vld [vmem:[%s3] sm:$0x1]
  %v444 = vlaneseq
  %v445 = vshrl.u32 %v444, 7
  %v446 = vsub.s32 0, %v445
  %v447 = vrot.slane %v443, %v446
  %v448 = vadd.f32 %v421, %v447
  %v449 = vadd.f32 %v427, %v447
  %v450 = vadd.f32 %v433, %v447
  %v451 = vadd.f32 %v439, %v447
  %v452 = vld [vmem:[%s3 + $0x1] sm:$0x1]
  %v453 = vlaneseq
  %v454 = vshrl.u32 %v453, 7
  %v455 = vsub.s32 0, %v454
  %v456 = vrot.slane %v452, %v455
  %v457 = vadd.f32 %v423, %v456
  %v458 = vadd.f32 %v429, %v456
  %v459 = vadd.f32 %v435, %v456
  %v460 = vadd.f32 %v441, %v456
  %v461 = vadd.f32 %v448, %v449
  %v462 = vadd.f32 %v461, %v450
  %v463 = vadd.f32 %v462, %v451
  %v464 = vrot.slane %v463, 4
  %v465 = vadd.f32 %v463, %v464
  %v466 = vrot.slane %v465, 2
  %v467 = vadd.f32 %v465, %v466
  %v468 = vrot.slane %v467, 1
  %v469 = vadd.f32 %v467, %v468
  %v470 = vmul.f32 %v469, 0.03125
  %v471 = vsub.f32 %v448, %v470
  %v472 = vsub.f32 %v449, %v470
  %v473 = vsub.f32 %v450, %v470
  %v474 = vsub.f32 %v451, %v470
  %v475 = vmul.f32 %v471, %v471
  %v476 = vmul.f32 %v472, %v472
  %v477 = vmul.f32 %v473, %v473
  %v478 = vmul.f32 %v474, %v474
  %v479 = vadd.f32 %v475, %v476
  %v480 = vadd.f32 %v479, %v477
  %v481 = vadd.f32 %v480, %v478
  %v482 = vrot.slane %v481, 4
  %v483 = vadd.f32 %v481, %v482
  %v484 = vrot.slane %v483, 2
  %v485 = vadd.f32 %v483, %v484
  %v486 = vrot.slane %v485, 1
  %v487 = vadd.f32 %v485, %v486
  %v488 = vmul.f32 %v487, 0.03125
  %v489 = vadd.f32 %v488, 1e-05
  %v490 = vrsqrt.pop %v489
  %v491 = vmul.f32 %v471, %v490
  %v492 = vmul.f32 %v472, %v490
  %v493 = vmul.f32 %v473, %v490
  %v494 = vmul.f32 %v474, %v490
  %v495 = vld [vmem:[%s3 + $0x2] sm:$0x1]
  %v496 = vlaneseq
  %v497 = vshrl.u32 %v496, 7
  %v498 = vsub.s32 0, %v497
  %v499 = vrot.slane %v495, %v498
  %v500 = vmul.f32 %v491, %v499
  %v501 = vmul.f32 %v492, %v499
  %v502 = vmul.f32 %v493, %v499
  %v503 = vmul.f32 %v494, %v499
  %v504 = vld [vmem:[%s3 + $0x3] sm:$0x1]
  %v505 = vlaneseq
  %v506 = vshrl.u32 %v505, 7
  %v507 = vsub.s32 0, %v506
  %v508 = vrot.slane %v504, %v507
  %v509 = vadd.f32 %v500, %v508
  %v510 = vadd.f32 %v501, %v508
  %v511 = vadd.f32 %v502, %v508
  %v512 = vadd.f32 %v503, %v508
  %v513 = vmax.f32 %v509, 0.0
  %v514 = vmax.f32 %v510, 0.0
  %v515 = vmax.f32 %v511, 0.0
  %v516 = vmax.f32 %v512, 0.0
  %v517 = vadd.f32 %v513, %v457
  %v518 = vadd.f32 %v514, %v458
  %v519 = vadd.f32 %v515, %v459
  %v520 = vadd.f32 %v516, %v460
  %v521 = vld [vmem:[%s4 + $0x100] sm:$0xff]
  %v522 = vld [vmem:[%s4 + $0x108] sm:$0xff]
  %v523 = vld [vmem:[%s4 + $0x110] sm:$0xff]
  %v524 = vld [vmem:[%s4 + $0x118] sm:$0xff]
  %v525 = vld [vmem:[%s4 + $0x120] sm:$0xff]
  %v526 = vld [vmem:[%s4 + $0x128] sm:$0xff]
  %v527 = vld [vmem:[%s4 + $0x130] sm:$0xff]
  %v528 = vld [vmem:[%s4 + $0x138] sm:$0xff]
  %v529 = vld [vmem:[%s4 + $0x140] sm:$0xff]
  %v530 = vld [vmem:[%s4 + $0x148] sm:$0xff]
  %v531 = vld [vmem:[%s4 + $0x150] sm:$0xff]
  %v532 = vld [vmem:[%s4 + $0x158] sm:$0xff]
  %v533 = vld [vmem:[%s4 + $0x160] sm:$0xff]
  %v534 = vld [vmem:[%s4 + $0x168] sm:$0xff]
  %v535 = vld [vmem:[%s4 + $0x170] sm:$0xff]
  %v536 = vld [vmem:[%s4 + $0x178] sm:$0xff]
  %v537 = vrot.slane %v517, 6
  %v538 = vrot.slane %v518, 6
  %v539 = vrot.slane %v519, 6
  %v540 = vrot.slane %v520, 6
  %vm541 = vcmp.lt.s32.totalorder %v24, 2
  %v542 = vsel %vm541, %v539, %v540
  %v543 = vsel %vm541, %v538, %v539
  %v544 = vsel %vm541, %v537, %v538
  %v545 = vsel %vm541, %v540, %v537
  %vm546 = vcmp.ge.f32.partialorder %v26, 2.0
  %vm547 = vcmp.ge.f32.partialorder %v27, 2.0
  %v548 = vsel %vm546, 1.0, 0.0
  %v549 = vsel %vm547, 1.0, 0.0
  %551 = vset.pattern.permute.xlu0 0
  %552 = vperm.xlu0 %551, %v548
  %v553 = vpop.permute.xlu0 %552
  %556 = vset.pattern.permute.xlu0 0
  %557 = vperm.xlu0 %556, %v549
  %v558 = vpop.permute.xlu0 %557
  %v560 = vmul.f32 %v545, %v553
  %v561 = vmul.f32 %v544, %v558
  %v562 = vmul.f32 %v543, %v553
  %v563 = vmul.f32 %v542, %v558
  %v564 = vld [vmem:[%s4] sm:$0xff]
  %v565 = vld [vmem:[%s4 + $0x8] sm:$0xff]
  %v566 = vld [vmem:[%s4 + $0x10] sm:$0xff]
  %v567 = vld [vmem:[%s4 + $0x18] sm:$0xff]
  %v568 = vld [vmem:[%s4 + $0x20] sm:$0xff]
  %v569 = vld [vmem:[%s4 + $0x28] sm:$0xff]
  %v570 = vld [vmem:[%s4 + $0x30] sm:$0xff]
  %v571 = vld [vmem:[%s4 + $0x38] sm:$0xff]
  %v572 = vld [vmem:[%s4 + $0x40] sm:$0xff]
  %v573 = vld [vmem:[%s4 + $0x48] sm:$0xff]
  %v574 = vld [vmem:[%s4 + $0x50] sm:$0xff]
  %v575 = vld [vmem:[%s4 + $0x58] sm:$0xff]
  %v576 = vld [vmem:[%s4 + $0x60] sm:$0xff]
  %v577 = vld [vmem:[%s4 + $0x68] sm:$0xff]
  %v578 = vld [vmem:[%s4 + $0x70] sm:$0xff]
  %v579 = vld [vmem:[%s4 + $0x78] sm:$0xff]
  %580 = vmatprep.subr.mxu0 0.0
  %581 = vmatpush1.msra.mxu0 %v579
  %582 = vmatprep.subr.mxu0 0.0
  %583 = vmatpush1.msra.mxu0 %v578
  %584 = vmatprep.subr.mxu0 0.0
  %585 = vmatpush1.msra.mxu0 %v577
  %586 = vmatprep.subr.mxu0 0.0
  %587 = vmatpush1.msra.mxu0 %v576
  %588 = vmatprep.subr.mxu0 0.0
  %589 = vmatpush1.msra.mxu0 %v575
  %590 = vmatprep.subr.mxu0 0.0
  %591 = vmatpush1.msra.mxu0 %v574
  %592 = vmatprep.subr.mxu0 0.0
  %593 = vmatpush1.msra.mxu0 %v573
  %594 = vmatprep.subr.mxu0 0.0
  %595 = vmatpush1.msra.mxu0 %v572
  %596 = vmatprep.subr.mxu0 0.0
  %597 = vmatpush1.msra.mxu0 %v571
  %598 = vmatprep.subr.mxu0 0.0
  %599 = vmatpush1.msra.mxu0 %v570
  %600 = vmatprep.subr.mxu0 0.0
  %601 = vmatpush1.msra.mxu0 %v569
  %602 = vmatprep.subr.mxu0 0.0
  %603 = vmatpush1.msra.mxu0 %v568
  %604 = vmatprep.subr.mxu0 0.0
  %605 = vmatpush1.msra.mxu0 %v567
  %606 = vmatprep.subr.mxu0 0.0
  %607 = vmatpush1.msra.mxu0 %v566
  %608 = vmatprep.subr.mxu0 0.0
  %609 = vmatpush1.msra.mxu0 %v565
  %610 = vmatprep.subr.mxu0 0.0
  %611 = vmatpush1.msra.mxu0 %v564
  %612 = vmatprep.subr.mxu0 0.0
  %613 = vmatpush2.msra.mxu0 0.0
  %614 = vmatprep.subr.mxu0 0.0
  %615 = vmatpush2.msra.mxu0 0.0
  %616 = vmatprep.subr.mxu0 0.0
  %617 = vmatpush2.msra.mxu0 0.0
  %618 = vmatprep.subr.mxu0 0.0
  %619 = vmatpush2.msra.mxu0 0.0
  %620 = vmatprep.subr.mxu0 0.0
  %621 = vmatpush2.msra.mxu0 0.0
  %622 = vmatprep.subr.mxu0 0.0
  %623 = vmatpush2.msra.mxu0 0.0
  %624 = vmatprep.subr.mxu0 0.0
  %625 = vmatpush2.msra.mxu0 0.0
  %626 = vmatprep.subr.mxu0 0.0
  %627 = vmatpush2.msra.mxu0 0.0
  %628 = vmatprep.subr.mxu0 0.0
  %629 = vmatpush2.msra.mxu0 0.0
  %630 = vmatprep.subr.mxu0 0.0
  %631 = vmatpush2.msra.mxu0 0.0
  %632 = vmatprep.subr.mxu0 0.0
  %633 = vmatpush2.msra.mxu0 0.0
  %634 = vmatprep.subr.mxu0 0.0
  %635 = vmatpush2.msra.mxu0 0.0
  %636 = vmatprep.subr.mxu0 0.0
  %637 = vmatpush2.msra.mxu0 0.0
  %638 = vmatprep.subr.mxu0 0.0
  %639 = vmatpush2.msra.mxu0 0.0
  %640 = vmatprep.subr.mxu0 0.0
  %641 = vmatpush2.msra.mxu0 0.0
  %642 = vmatprep.subr.mxu0 0.0
  %643 = vmatpush2.msra.mxu0 0.0
  %644 = vmatprep.mubr.f32.mxu0 0.0
  %645 = vmatmul.mubr.f32.gmra.mxu0 %v560
  %v646 = vpop.f32.mrf.mxu0
  %v647 = vadd.f32 0.0, %v646
  %v648 = vpop.f32.mrf.mxu0
  %649 = vmatprep.mubr.f32.mxu0 0.0
  %650 = vmatmul.mubr.f32.gmra.mxu0 %v561
  %v651 = vpop.f32.mrf.mxu0
  %v652 = vadd.f32 0.0, %v651
  %v653 = vpop.f32.mrf.mxu0
  %654 = vmatprep.mubr.f32.mxu0 0.0
  %655 = vmatmul.mubr.f32.gmra.mxu0 %v562
  %v656 = vpop.f32.mrf.mxu0
  %v657 = vadd.f32 0.0, %v656
  %v658 = vpop.f32.mrf.mxu0
  %659 = vmatprep.mubr.f32.mxu0 0.0
  %660 = vmatmul.mubr.f32.gmra.mxu0 %v563
  %v661 = vpop.f32.mrf.mxu0
  %v662 = vadd.f32 0.0, %v661
  %v663 = vpop.f32.mrf.mxu0
  %664 = vdwg.mxu0
  %665 = vmatprep.subr.mxu0 0.0
  %666 = vmatpush1.msra.mxu0 %v536
  %667 = vmatprep.subr.mxu0 0.0
  %668 = vmatpush1.msra.mxu0 %v535
  %669 = vmatprep.subr.mxu0 0.0
  %670 = vmatpush1.msra.mxu0 %v534
  %671 = vmatprep.subr.mxu0 0.0
  %672 = vmatpush1.msra.mxu0 %v533
  %673 = vmatprep.subr.mxu0 0.0
  %674 = vmatpush1.msra.mxu0 %v532
  %675 = vmatprep.subr.mxu0 0.0
  %676 = vmatpush1.msra.mxu0 %v531
  %677 = vmatprep.subr.mxu0 0.0
  %678 = vmatpush1.msra.mxu0 %v530
  %679 = vmatprep.subr.mxu0 0.0
  %680 = vmatpush1.msra.mxu0 %v529
  %681 = vmatprep.subr.mxu0 0.0
  %682 = vmatpush1.msra.mxu0 %v528
  %683 = vmatprep.subr.mxu0 0.0
  %684 = vmatpush1.msra.mxu0 %v527
  %685 = vmatprep.subr.mxu0 0.0
  %686 = vmatpush1.msra.mxu0 %v526
  %687 = vmatprep.subr.mxu0 0.0
  %688 = vmatpush1.msra.mxu0 %v525
  %689 = vmatprep.subr.mxu0 0.0
  %690 = vmatpush1.msra.mxu0 %v524
  %691 = vmatprep.subr.mxu0 0.0
  %692 = vmatpush1.msra.mxu0 %v523
  %693 = vmatprep.subr.mxu0 0.0
  %694 = vmatpush1.msra.mxu0 %v522
  %695 = vmatprep.subr.mxu0 0.0
  %696 = vmatpush1.msra.mxu0 %v521
  %697 = vmatprep.subr.mxu0 0.0
  %698 = vmatpush2.msra.mxu0 0.0
  %699 = vmatprep.subr.mxu0 0.0
  %700 = vmatpush2.msra.mxu0 0.0
  %701 = vmatprep.subr.mxu0 0.0
  %702 = vmatpush2.msra.mxu0 0.0
  %703 = vmatprep.subr.mxu0 0.0
  %704 = vmatpush2.msra.mxu0 0.0
  %705 = vmatprep.subr.mxu0 0.0
  %706 = vmatpush2.msra.mxu0 0.0
  %707 = vmatprep.subr.mxu0 0.0
  %708 = vmatpush2.msra.mxu0 0.0
  %709 = vmatprep.subr.mxu0 0.0
  %710 = vmatpush2.msra.mxu0 0.0
  %711 = vmatprep.subr.mxu0 0.0
  %712 = vmatpush2.msra.mxu0 0.0
  %713 = vmatprep.subr.mxu0 0.0
  %714 = vmatpush2.msra.mxu0 0.0
  %715 = vmatprep.subr.mxu0 0.0
  %716 = vmatpush2.msra.mxu0 0.0
  %717 = vmatprep.subr.mxu0 0.0
  %718 = vmatpush2.msra.mxu0 0.0
  %719 = vmatprep.subr.mxu0 0.0
  %720 = vmatpush2.msra.mxu0 0.0
  %721 = vmatprep.subr.mxu0 0.0
  %722 = vmatpush2.msra.mxu0 0.0
  %723 = vmatprep.subr.mxu0 0.0
  %724 = vmatpush2.msra.mxu0 0.0
  %725 = vmatprep.subr.mxu0 0.0
  %726 = vmatpush2.msra.mxu0 0.0
  %727 = vmatprep.subr.mxu0 0.0
  %728 = vmatpush2.msra.mxu0 0.0
  %729 = vmatprep.mubr.f32.mxu0 0.0
  %730 = vmatmul.mubr.f32.gmra.mxu0 %v517
  %v731 = vpop.f32.mrf.mxu0
  %v732 = vadd.f32 %v647, %v731
  %v733 = vpop.f32.mrf.mxu0
  %734 = vmatprep.mubr.f32.mxu0 0.0
  %735 = vmatmul.mubr.f32.gmra.mxu0 %v518
  %v736 = vpop.f32.mrf.mxu0
  %v737 = vadd.f32 %v652, %v736
  %v738 = vpop.f32.mrf.mxu0
  %739 = vmatprep.mubr.f32.mxu0 0.0
  %740 = vmatmul.mubr.f32.gmra.mxu0 %v519
  %v741 = vpop.f32.mrf.mxu0
  %v742 = vadd.f32 %v657, %v741
  %v743 = vpop.f32.mrf.mxu0
  %744 = vmatprep.mubr.f32.mxu0 0.0
  %745 = vmatmul.mubr.f32.gmra.mxu0 %v520
  %v746 = vpop.f32.mrf.mxu0
  %v747 = vadd.f32 %v662, %v746
  %v748 = vpop.f32.mrf.mxu0
  %749 = vdwg.mxu0
  %v750 = vrot.slane %v517, 7
  %v751 = vrot.slane %v518, 7
  %v752 = vrot.slane %v519, 7
  %v753 = vrot.slane %v520, 7
  %v754 = vsel %vm238, %v752, %v753
  %v755 = vsel %vm238, %v751, %v752
  %v756 = vsel %vm238, %v750, %v751
  %v757 = vsel %vm238, %v753, %v750
  %v758 = vmul.f32 %v757, %v250
  %v759 = vmul.f32 %v756, %v255
  %v760 = vmul.f32 %v755, %v250
  %v761 = vmul.f32 %v754, %v255
  %v762 = vld [vmem:[%s4 + $0x80] sm:$0xff]
  %v763 = vld [vmem:[%s4 + $0x88] sm:$0xff]
  %v764 = vld [vmem:[%s4 + $0x90] sm:$0xff]
  %v765 = vld [vmem:[%s4 + $0x98] sm:$0xff]
  %v766 = vld [vmem:[%s4 + $0xa0] sm:$0xff]
  %v767 = vld [vmem:[%s4 + $0xa8] sm:$0xff]
  %v768 = vld [vmem:[%s4 + $0xb0] sm:$0xff]
  %v769 = vld [vmem:[%s4 + $0xb8] sm:$0xff]
  %v770 = vld [vmem:[%s4 + $0xc0] sm:$0xff]
  %v771 = vld [vmem:[%s4 + $0xc8] sm:$0xff]
  %v772 = vld [vmem:[%s4 + $0xd0] sm:$0xff]
  %v773 = vld [vmem:[%s4 + $0xd8] sm:$0xff]
  %v774 = vld [vmem:[%s4 + $0xe0] sm:$0xff]
  %v775 = vld [vmem:[%s4 + $0xe8] sm:$0xff]
  %v776 = vld [vmem:[%s4 + $0xf0] sm:$0xff]
  %v777 = vld [vmem:[%s4 + $0xf8] sm:$0xff]
  %778 = vmatprep.subr.mxu0 0.0
  %779 = vmatpush1.msra.mxu0 %v777
  %780 = vmatprep.subr.mxu0 0.0
  %781 = vmatpush1.msra.mxu0 %v776
  %782 = vmatprep.subr.mxu0 0.0
  %783 = vmatpush1.msra.mxu0 %v775
  %784 = vmatprep.subr.mxu0 0.0
  %785 = vmatpush1.msra.mxu0 %v774
  %786 = vmatprep.subr.mxu0 0.0
  %787 = vmatpush1.msra.mxu0 %v773
  %788 = vmatprep.subr.mxu0 0.0
  %789 = vmatpush1.msra.mxu0 %v772
  %790 = vmatprep.subr.mxu0 0.0
  %791 = vmatpush1.msra.mxu0 %v771
  %792 = vmatprep.subr.mxu0 0.0
  %793 = vmatpush1.msra.mxu0 %v770
  %794 = vmatprep.subr.mxu0 0.0
  %795 = vmatpush1.msra.mxu0 %v769
  %796 = vmatprep.subr.mxu0 0.0
  %797 = vmatpush1.msra.mxu0 %v768
  %798 = vmatprep.subr.mxu0 0.0
  %799 = vmatpush1.msra.mxu0 %v767
  %800 = vmatprep.subr.mxu0 0.0
  %801 = vmatpush1.msra.mxu0 %v766
  %802 = vmatprep.subr.mxu0 0.0
  %803 = vmatpush1.msra.mxu0 %v765
  %804 = vmatprep.subr.mxu0 0.0
  %805 = vmatpush1.msra.mxu0 %v764
  %806 = vmatprep.subr.mxu0 0.0
  %807 = vmatpush1.msra.mxu0 %v763
  %808 = vmatprep.subr.mxu0 0.0
  %809 = vmatpush1.msra.mxu0 %v762
  %810 = vmatprep.subr.mxu0 0.0
  %811 = vmatpush2.msra.mxu0 0.0
  %812 = vmatprep.subr.mxu0 0.0
  %813 = vmatpush2.msra.mxu0 0.0
  %814 = vmatprep.subr.mxu0 0.0
  %815 = vmatpush2.msra.mxu0 0.0
  %816 = vmatprep.subr.mxu0 0.0
  %817 = vmatpush2.msra.mxu0 0.0
  %818 = vmatprep.subr.mxu0 0.0
  %819 = vmatpush2.msra.mxu0 0.0
  %820 = vmatprep.subr.mxu0 0.0
  %821 = vmatpush2.msra.mxu0 0.0
  %822 = vmatprep.subr.mxu0 0.0
  %823 = vmatpush2.msra.mxu0 0.0
  %824 = vmatprep.subr.mxu0 0.0
  %825 = vmatpush2.msra.mxu0 0.0
  %826 = vmatprep.subr.mxu0 0.0
  %827 = vmatpush2.msra.mxu0 0.0
  %828 = vmatprep.subr.mxu0 0.0
  %829 = vmatpush2.msra.mxu0 0.0
  %830 = vmatprep.subr.mxu0 0.0
  %831 = vmatpush2.msra.mxu0 0.0
  %832 = vmatprep.subr.mxu0 0.0
  %833 = vmatpush2.msra.mxu0 0.0
  %834 = vmatprep.subr.mxu0 0.0
  %835 = vmatpush2.msra.mxu0 0.0
  %836 = vmatprep.subr.mxu0 0.0
  %837 = vmatpush2.msra.mxu0 0.0
  %838 = vmatprep.subr.mxu0 0.0
  %839 = vmatpush2.msra.mxu0 0.0
  %840 = vmatprep.subr.mxu0 0.0
  %841 = vmatpush2.msra.mxu0 0.0
  %842 = vmatprep.mubr.f32.mxu0 0.0
  %843 = vmatmul.mubr.f32.gmra.mxu0 %v758
  %v844 = vpop.f32.mrf.mxu0
  %v845 = vadd.f32 0.0, %v844
  %v846 = vpop.f32.mrf.mxu0
  %847 = vmatprep.mubr.f32.mxu0 0.0
  %848 = vmatmul.mubr.f32.gmra.mxu0 %v759
  %v849 = vpop.f32.mrf.mxu0
  %v850 = vadd.f32 0.0, %v849
  %v851 = vpop.f32.mrf.mxu0
  %852 = vmatprep.mubr.f32.mxu0 0.0
  %853 = vmatmul.mubr.f32.gmra.mxu0 %v760
  %v854 = vpop.f32.mrf.mxu0
  %v855 = vadd.f32 0.0, %v854
  %v856 = vpop.f32.mrf.mxu0
  %857 = vmatprep.mubr.f32.mxu0 0.0
  %858 = vmatmul.mubr.f32.gmra.mxu0 %v761
  %v859 = vpop.f32.mrf.mxu0
  %v860 = vadd.f32 0.0, %v859
  %v861 = vpop.f32.mrf.mxu0
  %862 = vdwg.mxu0
  %v863 = vadd.f32 %v732, %v845
  %v864 = vadd.f32 %v737, %v850
  %v865 = vadd.f32 %v742, %v855
  %v866 = vadd.f32 %v747, %v860
  %v867 = vrot.slane %v517, 1
  %v868 = vrot.slane %v518, 1
  %v869 = vrot.slane %v519, 1
  %v870 = vrot.slane %v520, 1
  %v871 = vsel %vm265, %v869, %v870
  %v872 = vsel %vm265, %v868, %v869
  %v873 = vsel %vm265, %v867, %v868
  %v874 = vsel %vm265, %v870, %v867
  %v875 = vmul.f32 %v873, %v277
  %v876 = vmul.f32 %v872, %v282
  %v877 = vmul.f32 %v871, %v277
  %v878 = vmul.f32 %v874, %v282
  %v879 = vld [vmem:[%s4 + $0x180] sm:$0xff]
  %v880 = vld [vmem:[%s4 + $0x188] sm:$0xff]
  %v881 = vld [vmem:[%s4 + $0x190] sm:$0xff]
  %v882 = vld [vmem:[%s4 + $0x198] sm:$0xff]
  %v883 = vld [vmem:[%s4 + $0x1a0] sm:$0xff]
  %v884 = vld [vmem:[%s4 + $0x1a8] sm:$0xff]
  %v885 = vld [vmem:[%s4 + $0x1b0] sm:$0xff]
  %v886 = vld [vmem:[%s4 + $0x1b8] sm:$0xff]
  %v887 = vld [vmem:[%s4 + $0x1c0] sm:$0xff]
  %v888 = vld [vmem:[%s4 + $0x1c8] sm:$0xff]
  %v889 = vld [vmem:[%s4 + $0x1d0] sm:$0xff]
  %v890 = vld [vmem:[%s4 + $0x1d8] sm:$0xff]
  %v891 = vld [vmem:[%s4 + $0x1e0] sm:$0xff]
  %v892 = vld [vmem:[%s4 + $0x1e8] sm:$0xff]
  %v893 = vld [vmem:[%s4 + $0x1f0] sm:$0xff]
  %v894 = vld [vmem:[%s4 + $0x1f8] sm:$0xff]
  %895 = vmatprep.subr.mxu0 0.0
  %896 = vmatpush1.msra.mxu0 %v894
  %897 = vmatprep.subr.mxu0 0.0
  %898 = vmatpush1.msra.mxu0 %v893
  %899 = vmatprep.subr.mxu0 0.0
  %900 = vmatpush1.msra.mxu0 %v892
  %901 = vmatprep.subr.mxu0 0.0
  %902 = vmatpush1.msra.mxu0 %v891
  %903 = vmatprep.subr.mxu0 0.0
  %904 = vmatpush1.msra.mxu0 %v890
  %905 = vmatprep.subr.mxu0 0.0
  %906 = vmatpush1.msra.mxu0 %v889
  %907 = vmatprep.subr.mxu0 0.0
  %908 = vmatpush1.msra.mxu0 %v888
  %909 = vmatprep.subr.mxu0 0.0
  %910 = vmatpush1.msra.mxu0 %v887
  %911 = vmatprep.subr.mxu0 0.0
  %912 = vmatpush1.msra.mxu0 %v886
  %913 = vmatprep.subr.mxu0 0.0
  %914 = vmatpush1.msra.mxu0 %v885
  %915 = vmatprep.subr.mxu0 0.0
  %916 = vmatpush1.msra.mxu0 %v884
  %917 = vmatprep.subr.mxu0 0.0
  %918 = vmatpush1.msra.mxu0 %v883
  %919 = vmatprep.subr.mxu0 0.0
  %920 = vmatpush1.msra.mxu0 %v882
  %921 = vmatprep.subr.mxu0 0.0
  %922 = vmatpush1.msra.mxu0 %v881
  %923 = vmatprep.subr.mxu0 0.0
  %924 = vmatpush1.msra.mxu0 %v880
  %925 = vmatprep.subr.mxu0 0.0
  %926 = vmatpush1.msra.mxu0 %v879
  %927 = vmatprep.subr.mxu0 0.0
  %928 = vmatpush2.msra.mxu0 0.0
  %929 = vmatprep.subr.mxu0 0.0
  %930 = vmatpush2.msra.mxu0 0.0
  %931 = vmatprep.subr.mxu0 0.0
  %932 = vmatpush2.msra.mxu0 0.0
  %933 = vmatprep.subr.mxu0 0.0
  %934 = vmatpush2.msra.mxu0 0.0
  %935 = vmatprep.subr.mxu0 0.0
  %936 = vmatpush2.msra.mxu0 0.0
  %937 = vmatprep.subr.mxu0 0.0
  %938 = vmatpush2.msra.mxu0 0.0
  %939 = vmatprep.subr.mxu0 0.0
  %940 = vmatpush2.msra.mxu0 0.0
  %941 = vmatprep.subr.mxu0 0.0
  %942 = vmatpush2.msra.mxu0 0.0
  %943 = vmatprep.subr.mxu0 0.0
  %944 = vmatpush2.msra.mxu0 0.0
  %945 = vmatprep.subr.mxu0 0.0
  %946 = vmatpush2.msra.mxu0 0.0
  %947 = vmatprep.subr.mxu0 0.0
  %948 = vmatpush2.msra.mxu0 0.0
  %949 = vmatprep.subr.mxu0 0.0
  %950 = vmatpush2.msra.mxu0 0.0
  %951 = vmatprep.subr.mxu0 0.0
  %952 = vmatpush2.msra.mxu0 0.0
  %953 = vmatprep.subr.mxu0 0.0
  %954 = vmatpush2.msra.mxu0 0.0
  %955 = vmatprep.subr.mxu0 0.0
  %956 = vmatpush2.msra.mxu0 0.0
  %957 = vmatprep.subr.mxu0 0.0
  %958 = vmatpush2.msra.mxu0 0.0
  %959 = vmatprep.mubr.f32.mxu0 0.0
  %960 = vmatmul.mubr.f32.gmra.mxu0 %v875
  %v961 = vpop.f32.mrf.mxu0
  %v962 = vadd.f32 0.0, %v961
  %v963 = vpop.f32.mrf.mxu0
  %964 = vmatprep.mubr.f32.mxu0 0.0
  %965 = vmatmul.mubr.f32.gmra.mxu0 %v876
  %v966 = vpop.f32.mrf.mxu0
  %v967 = vadd.f32 0.0, %v966
  %v968 = vpop.f32.mrf.mxu0
  %969 = vmatprep.mubr.f32.mxu0 0.0
  %970 = vmatmul.mubr.f32.gmra.mxu0 %v877
  %v971 = vpop.f32.mrf.mxu0
  %v972 = vadd.f32 0.0, %v971
  %v973 = vpop.f32.mrf.mxu0
  %974 = vmatprep.mubr.f32.mxu0 0.0
  %975 = vmatmul.mubr.f32.gmra.mxu0 %v878
  %v976 = vpop.f32.mrf.mxu0
  %v977 = vadd.f32 0.0, %v976
  %v978 = vpop.f32.mrf.mxu0
  %979 = vdwg.mxu0
  %v980 = vadd.f32 %v863, %v962
  %v981 = vadd.f32 %v864, %v967
  %v982 = vadd.f32 %v865, %v972
  %v983 = vadd.f32 %v866, %v977
  %v984 = vrot.slane %v517, 2
  %v985 = vrot.slane %v518, 2
  %v986 = vrot.slane %v519, 2
  %v987 = vrot.slane %v520, 2
  %vm988 = vcmp.lt.s32.totalorder %v24, 6
  %v989 = vsel %vm988, %v986, %v987
  %v990 = vsel %vm988, %v985, %v986
  %v991 = vsel %vm988, %v984, %v985
  %v992 = vsel %vm988, %v987, %v984
  %vm993 = vcmp.lt.f32.partialorder %v26, 14.0
  %vm994 = vcmp.lt.f32.partialorder %v27, 14.0
  %v995 = vsel %vm993, 1.0, 0.0
  %v996 = vsel %vm994, 1.0, 0.0
  %998 = vset.pattern.permute.xlu0 0
  %999 = vperm.xlu0 %998, %v995
  %v1000 = vpop.permute.xlu0 %999
  %1003 = vset.pattern.permute.xlu0 0
  %1004 = vperm.xlu0 %1003, %v996
  %v1005 = vpop.permute.xlu0 %1004
  %v1007 = vmul.f32 %v991, %v1000
  %v1008 = vmul.f32 %v990, %v1005
  %v1009 = vmul.f32 %v989, %v1000
  %v1010 = vmul.f32 %v992, %v1005
  %v1011 = vld [vmem:[%s4 + $0x200] sm:$0xff]
  %v1012 = vld [vmem:[%s4 + $0x208] sm:$0xff]
  %v1013 = vld [vmem:[%s4 + $0x210] sm:$0xff]
  %v1014 = vld [vmem:[%s4 + $0x218] sm:$0xff]
  %v1015 = vld [vmem:[%s4 + $0x220] sm:$0xff]
  %v1016 = vld [vmem:[%s4 + $0x228] sm:$0xff]
  %v1017 = vld [vmem:[%s4 + $0x230] sm:$0xff]
  %v1018 = vld [vmem:[%s4 + $0x238] sm:$0xff]
  %v1019 = vld [vmem:[%s4 + $0x240] sm:$0xff]
  %v1020 = vld [vmem:[%s4 + $0x248] sm:$0xff]
  %v1021 = vld [vmem:[%s4 + $0x250] sm:$0xff]
  %v1022 = vld [vmem:[%s4 + $0x258] sm:$0xff]
  %v1023 = vld [vmem:[%s4 + $0x260] sm:$0xff]
  %v1024 = vld [vmem:[%s4 + $0x268] sm:$0xff]
  %v1025 = vld [vmem:[%s4 + $0x270] sm:$0xff]
  %v1026 = vld [vmem:[%s4 + $0x278] sm:$0xff]
  %1027 = vmatprep.subr.mxu0 0.0
  %1028 = vmatpush1.msra.mxu0 %v1026
  %1029 = vmatprep.subr.mxu0 0.0
  %1030 = vmatpush1.msra.mxu0 %v1025
  %1031 = vmatprep.subr.mxu0 0.0
  %1032 = vmatpush1.msra.mxu0 %v1024
  %1033 = vmatprep.subr.mxu0 0.0
  %1034 = vmatpush1.msra.mxu0 %v1023
  %1035 = vmatprep.subr.mxu0 0.0
  %1036 = vmatpush1.msra.mxu0 %v1022
  %1037 = vmatprep.subr.mxu0 0.0
  %1038 = vmatpush1.msra.mxu0 %v1021
  %1039 = vmatprep.subr.mxu0 0.0
  %1040 = vmatpush1.msra.mxu0 %v1020
  %1041 = vmatprep.subr.mxu0 0.0
  %1042 = vmatpush1.msra.mxu0 %v1019
  %1043 = vmatprep.subr.mxu0 0.0
  %1044 = vmatpush1.msra.mxu0 %v1018
  %1045 = vmatprep.subr.mxu0 0.0
  %1046 = vmatpush1.msra.mxu0 %v1017
  %1047 = vmatprep.subr.mxu0 0.0
  %1048 = vmatpush1.msra.mxu0 %v1016
  %1049 = vmatprep.subr.mxu0 0.0
  %1050 = vmatpush1.msra.mxu0 %v1015
  %1051 = vmatprep.subr.mxu0 0.0
  %1052 = vmatpush1.msra.mxu0 %v1014
  %1053 = vmatprep.subr.mxu0 0.0
  %1054 = vmatpush1.msra.mxu0 %v1013
  %1055 = vmatprep.subr.mxu0 0.0
  %1056 = vmatpush1.msra.mxu0 %v1012
  %1057 = vmatprep.subr.mxu0 0.0
  %1058 = vmatpush1.msra.mxu0 %v1011
  %1059 = vmatprep.subr.mxu0 0.0
  %1060 = vmatpush2.msra.mxu0 0.0
  %1061 = vmatprep.subr.mxu0 0.0
  %1062 = vmatpush2.msra.mxu0 0.0
  %1063 = vmatprep.subr.mxu0 0.0
  %1064 = vmatpush2.msra.mxu0 0.0
  %1065 = vmatprep.subr.mxu0 0.0
  %1066 = vmatpush2.msra.mxu0 0.0
  %1067 = vmatprep.subr.mxu0 0.0
  %1068 = vmatpush2.msra.mxu0 0.0
  %1069 = vmatprep.subr.mxu0 0.0
  %1070 = vmatpush2.msra.mxu0 0.0
  %1071 = vmatprep.subr.mxu0 0.0
  %1072 = vmatpush2.msra.mxu0 0.0
  %1073 = vmatprep.subr.mxu0 0.0
  %1074 = vmatpush2.msra.mxu0 0.0
  %1075 = vmatprep.subr.mxu0 0.0
  %1076 = vmatpush2.msra.mxu0 0.0
  %1077 = vmatprep.subr.mxu0 0.0
  %1078 = vmatpush2.msra.mxu0 0.0
  %1079 = vmatprep.subr.mxu0 0.0
  %1080 = vmatpush2.msra.mxu0 0.0
  %1081 = vmatprep.subr.mxu0 0.0
  %1082 = vmatpush2.msra.mxu0 0.0
  %1083 = vmatprep.subr.mxu0 0.0
  %1084 = vmatpush2.msra.mxu0 0.0
  %1085 = vmatprep.subr.mxu0 0.0
  %1086 = vmatpush2.msra.mxu0 0.0
  %1087 = vmatprep.subr.mxu0 0.0
  %1088 = vmatpush2.msra.mxu0 0.0
  %1089 = vmatprep.subr.mxu0 0.0
  %1090 = vmatpush2.msra.mxu0 0.0
  %1091 = vmatprep.mubr.f32.mxu0 0.0
  %1092 = vmatmul.mubr.f32.gmra.mxu0 %v1007
  %v1093 = vpop.f32.mrf.mxu0
  %v1094 = vadd.f32 0.0, %v1093
  %v1095 = vpop.f32.mrf.mxu0
  %1096 = vmatprep.mubr.f32.mxu0 0.0
  %1097 = vmatmul.mubr.f32.gmra.mxu0 %v1008
  %v1098 = vpop.f32.mrf.mxu0
  %v1099 = vadd.f32 0.0, %v1098
  %v1100 = vpop.f32.mrf.mxu0
  %1101 = vmatprep.mubr.f32.mxu0 0.0
  %1102 = vmatmul.mubr.f32.gmra.mxu0 %v1009
  %v1103 = vpop.f32.mrf.mxu0
  %v1104 = vadd.f32 0.0, %v1103
  %v1105 = vpop.f32.mrf.mxu0
  %1106 = vmatprep.mubr.f32.mxu0 0.0
  %1107 = vmatmul.mubr.f32.gmra.mxu0 %v1010
  %v1108 = vpop.f32.mrf.mxu0
  %v1109 = vadd.f32 0.0, %v1108
  %v1110 = vpop.f32.mrf.mxu0
  %1111 = vdwg.mxu0
  %v1112 = vadd.f32 %v980, %v1094
  %v1113 = vadd.f32 %v981, %v1099
  %v1114 = vadd.f32 %v982, %v1104
  %v1115 = vadd.f32 %v983, %v1109
  %v1116 = vld [vmem:[%s5] sm:$0x1]
  %v1117 = vlaneseq
  %v1118 = vshrl.u32 %v1117, 7
  %v1119 = vsub.s32 0, %v1118
  %v1120 = vrot.slane %v1116, %v1119
  %v1121 = vadd.f32 %v1112, %v1120
  %v1122 = vadd.f32 %v1113, %v1120
  %v1123 = vadd.f32 %v1114, %v1120
  %v1124 = vadd.f32 %v1115, %v1120
  %vm1125 = vcmask 523264
  %v1126 = vsel %vm1125, %v1121, 0.0
  %v1127 = vsel %vm1125, %v1122, 0.0
  %v1128 = vadd.f32 %v1126, %v1127
  %v1129 = vsel %vm1125, %v1123, 0.0
  %v1130 = vadd.f32 %v1128, %v1129
  %v1131 = vsel %vm1125, %v1124, 0.0
  %v1132 = vadd.f32 %v1130, %v1131
  %v1133 = vrot.slane %v1132, 4
  %v1134 = vadd.f32 %v1132, %v1133
  %v1135 = vrot.slane %v1134, 2
  %v1136 = vadd.f32 %v1134, %v1135
  %v1137 = vrot.slane %v1136, 1
  %v1138 = vadd.f32 %v1136, %v1137
  %v1139 = vmul.f32 %v1138, 0.03125
  %v1140 = vsub.f32 %v1121, %v1139
  %v1141 = vsub.f32 %v1122, %v1139
  %v1142 = vsub.f32 %v1123, %v1139
  %v1143 = vsub.f32 %v1124, %v1139
  %v1144 = vmul.f32 %v1140, %v1140
  %v1145 = vmul.f32 %v1141, %v1141
  %v1146 = vmul.f32 %v1142, %v1142
  %v1147 = vmul.f32 %v1143, %v1143
  %v1148 = vsel %vm1125, %v1144, 0.0
  %v1149 = vsel %vm1125, %v1145, 0.0
  %v1150 = vadd.f32 %v1148, %v1149
  %v1151 = vsel %vm1125, %v1146, 0.0
  %v1152 = vadd.f32 %v1150, %v1151
  %v1153 = vsel %vm1125, %v1147, 0.0
  %v1154 = vadd.f32 %v1152, %v1153
  %v1155 = vrot.slane %v1154, 4
  %v1156 = vadd.f32 %v1154, %v1155
  %v1157 = vrot.slane %v1156, 2
  %v1158 = vadd.f32 %v1156, %v1157
  %v1159 = vrot.slane %v1158, 1
  %v1160 = vadd.f32 %v1158, %v1159
  %v1161 = vmul.f32 %v1160, 0.03125
  %v1162 = vadd.f32 %v1161, 1e-05
  %v1163 = vrsqrt.pop %v1162
  %v1164 = vmul.f32 %v1140, %v1163
  %v1165 = vmul.f32 %v1141, %v1163
  %v1166 = vmul.f32 %v1142, %v1163
  %v1167 = vmul.f32 %v1143, %v1163
  %v1168 = vld [vmem:[%s5 + $0x1] sm:$0x1]
  %v1169 = vlaneseq
  %v1170 = vshrl.u32 %v1169, 7
  %v1171 = vsub.s32 0, %v1170
  %v1172 = vrot.slane %v1168, %v1171
  %v1173 = vmul.f32 %v1164, %v1172
  %v1174 = vmul.f32 %v1165, %v1172
  %v1175 = vmul.f32 %v1166, %v1172
  %v1176 = vmul.f32 %v1167, %v1172
  %v1177 = vld [vmem:[%s5 + $0x2] sm:$0x1]
  %v1178 = vlaneseq
  %v1179 = vshrl.u32 %v1178, 7
  %v1180 = vsub.s32 0, %v1179
  %v1181 = vrot.slane %v1177, %v1180
  %v1182 = vadd.f32 %v1173, %v1181
  %v1183 = vadd.f32 %v1174, %v1181
  %v1184 = vadd.f32 %v1175, %v1181
  %v1185 = vadd.f32 %v1176, %v1181
  %v1186 = vmax.f32 %v1182, 0.0
  %v1187 = vmax.f32 %v1183, 0.0
  %v1188 = vmax.f32 %v1184, 0.0
  %v1189 = vmax.f32 %v1185, 0.0
  %v1190 = vld [vmem:[%s5 + $0x5] sm:$0x1]
  %v1191 = vlaneseq
  %v1192 = vshrl.u32 %v1191, 7
  %v1193 = vsub.s32 0, %v1192
  %v1194 = vrot.slane %v1190, %v1193
  %v1195 = vmul.f32 %v1186, %v1194
  %v1196 = vmul.f32 %v1187, %v1194
  %v1197 = vmul.f32 %v1188, %v1194
  %v1198 = vmul.f32 %v1189, %v1194
  %v1199 = vrot.slane %v1186, 6
  %v1200 = vrot.slane %v1187, 6
  %v1201 = vrot.slane %v1188, 6
  %v1202 = vrot.slane %v1189, 6
  %v1203 = vsel %vm541, %v1201, %v1202
  %v1204 = vsel %vm541, %v1200, %v1201
  %v1205 = vsel %vm541, %v1199, %v1200
  %v1206 = vsel %vm541, %v1202, %v1199
  %v1207 = vmul.f32 %v1206, %v553
  %v1208 = vmul.f32 %v1205, %v558
  %v1209 = vmul.f32 %v1204, %v553
  %v1210 = vmul.f32 %v1203, %v558
  %v1211 = vld [vmem:[%s5 + $0x3] sm:$0x1]
  %v1212 = vlaneseq
  %v1213 = vshrl.u32 %v1212, 7
  %v1214 = vsub.s32 0, %v1213
  %v1215 = vrot.slane %v1211, %v1214
  %v1216 = vmul.f32 %v1207, %v1215
  %v1217 = vmul.f32 %v1208, %v1215
  %v1218 = vmul.f32 %v1209, %v1215
  %v1219 = vmul.f32 %v1210, %v1215
  %v1220 = vadd.f32 %v1195, %v1216
  %v1221 = vadd.f32 %v1196, %v1217
  %v1222 = vadd.f32 %v1197, %v1218
  %v1223 = vadd.f32 %v1198, %v1219
  %v1224 = vrot.slane %v1186, 7
  %v1225 = vrot.slane %v1187, 7
  %v1226 = vrot.slane %v1188, 7
  %v1227 = vrot.slane %v1189, 7
  %v1228 = vsel %vm238, %v1226, %v1227
  %v1229 = vsel %vm238, %v1225, %v1226
  %v1230 = vsel %vm238, %v1224, %v1225
  %v1231 = vsel %vm238, %v1227, %v1224
  %v1232 = vmul.f32 %v1231, %v250
  %v1233 = vmul.f32 %v1230, %v255
  %v1234 = vmul.f32 %v1229, %v250
  %v1235 = vmul.f32 %v1228, %v255
  %v1236 = vld [vmem:[%s5 + $0x4] sm:$0x1]
  %v1237 = vlaneseq
  %v1238 = vshrl.u32 %v1237, 7
  %v1239 = vsub.s32 0, %v1238
  %v1240 = vrot.slane %v1236, %v1239
  %v1241 = vmul.f32 %v1232, %v1240
  %v1242 = vmul.f32 %v1233, %v1240
  %v1243 = vmul.f32 %v1234, %v1240
  %v1244 = vmul.f32 %v1235, %v1240
  %v1245 = vadd.f32 %v1220, %v1241
  %v1246 = vadd.f32 %v1221, %v1242
  %v1247 = vadd.f32 %v1222, %v1243
  %v1248 = vadd.f32 %v1223, %v1244
  %v1249 = vrot.slane %v1186, 1
  %v1250 = vrot.slane %v1187, 1
  %v1251 = vrot.slane %v1188, 1
  %v1252 = vrot.slane %v1189, 1
  %v1253 = vsel %vm265, %v1251, %v1252
  %v1254 = vsel %vm265, %v1250, %v1251
  %v1255 = vsel %vm265, %v1249, %v1250
  %v1256 = vsel %vm265, %v1252, %v1249
  %v1257 = vmul.f32 %v1255, %v277
  %v1258 = vmul.f32 %v1254, %v282
  %v1259 = vmul.f32 %v1253, %v277
  %v1260 = vmul.f32 %v1256, %v282
  %v1261 = vld [vmem:[%s5 + $0x6] sm:$0x1]
  %v1262 = vlaneseq
  %v1263 = vshrl.u32 %v1262, 7
  %v1264 = vsub.s32 0, %v1263
  %v1265 = vrot.slane %v1261, %v1264
  %v1266 = vmul.f32 %v1257, %v1265
  %v1267 = vmul.f32 %v1258, %v1265
  %v1268 = vmul.f32 %v1259, %v1265
  %v1269 = vmul.f32 %v1260, %v1265
  %v1270 = vadd.f32 %v1245, %v1266
  %v1271 = vadd.f32 %v1246, %v1267
  %v1272 = vadd.f32 %v1247, %v1268
  %v1273 = vadd.f32 %v1248, %v1269
  %v1274 = vrot.slane %v1186, 2
  %v1275 = vrot.slane %v1187, 2
  %v1276 = vrot.slane %v1188, 2
  %v1277 = vrot.slane %v1189, 2
  %v1278 = vsel %vm988, %v1276, %v1277
  %v1279 = vsel %vm988, %v1275, %v1276
  %v1280 = vsel %vm988, %v1274, %v1275
  %v1281 = vsel %vm988, %v1277, %v1274
  %v1282 = vmul.f32 %v1280, %v1000
  %v1283 = vmul.f32 %v1279, %v1005
  %v1284 = vmul.f32 %v1278, %v1000
  %v1285 = vmul.f32 %v1281, %v1005
  %v1286 = vld [vmem:[%s5 + $0x7] sm:$0x1]
  %v1287 = vlaneseq
  %v1288 = vshrl.u32 %v1287, 7
  %v1289 = vsub.s32 0, %v1288
  %v1290 = vrot.slane %v1286, %v1289
  %v1291 = vmul.f32 %v1282, %v1290
  %v1292 = vmul.f32 %v1283, %v1290
  %v1293 = vmul.f32 %v1284, %v1290
  %v1294 = vmul.f32 %v1285, %v1290
  %v1295 = vadd.f32 %v1270, %v1291
  %v1296 = vadd.f32 %v1271, %v1292
  %v1297 = vadd.f32 %v1272, %v1293
  %v1298 = vadd.f32 %v1273, %v1294
  %v1299 = vsel %vm1125, %v1295, 0.0
  %1300 = vadd.xlane.f32.xlu0 %v1299
  %v1301 = vpop.xlane.xlu0 %1300
  %v1302 = vsel %vm1125, %v1296, 0.0
  %1303 = vadd.xlane.f32.xlu0 %v1302
  %v1304 = vpop.xlane.xlu0 %1303
  %v1305 = vsel %vm1125, %v1297, 0.0
  %1306 = vadd.xlane.f32.xlu0 %v1305
  %v1307 = vpop.xlane.xlu0 %1306
  %v1308 = vsel %vm1125, %v1298, 0.0
  %1309 = vadd.xlane.f32.xlu0 %v1308
  %v1310 = vpop.xlane.xlu0 %1309
  %v1311 = vld [vmem:[%s5 + $0x8] sm:$0x1]
  %v1312 = vlaneseq
  %v1313 = vshrl.u32 %v1312, 7
  %v1314 = vsub.s32 0, %v1313
  %v1315 = vrot.slane %v1311, %v1314
  %v1316 = vadd.f32 %v1301, %v1315
  %v1317 = vadd.f32 %v1304, %v1315
  %v1318 = vadd.f32 %v1307, %v1315
  %v1319 = vadd.f32 %v1310, %v1315
  %vm1320 = vcmp.gt.f32.partialorder %v1316, 20.0
  %vm1321 = vcmp.gt.f32.partialorder %v1317, 20.0
  %vm1322 = vcmp.gt.f32.partialorder %v1318, 20.0
  %vm1323 = vcmp.gt.f32.partialorder %v1319, 20.0
  %v1324 = vmin.f32 %v1316, 20.0
  %v1325 = vmin.f32 %v1317, 20.0
  %v1326 = vmin.f32 %v1318, 20.0
  %v1327 = vmin.f32 %v1319, 20.0
  %v1328 = vmul.f32 %v1324, 1.442695
  %v1329 = vpow.pop %v1328
  %v1330 = vmul.f32 %v1325, 1.442695
  %v1331 = vpow.pop %v1330
  %v1332 = vmul.f32 %v1326, 1.442695
  %v1333 = vpow.pop %v1332
  %v1334 = vmul.f32 %v1327, 1.442695
  %v1335 = vpow.pop %v1334
  %v1336 = vadd.f32 %v1329, 1.0
  %v1337 = vadd.f32 %v1331, 1.0
  %v1338 = vadd.f32 %v1333, 1.0
  %v1339 = vadd.f32 %v1335, 1.0
  %v1340 = vlog2.pop %v1336
  %v1341 = vmul.f32 %v1340, 0.6931472
  %v1342 = vlog2.pop %v1337
  %v1343 = vmul.f32 %v1342, 0.6931472
  %v1344 = vlog2.pop %v1338
  %v1345 = vmul.f32 %v1344, 0.6931472
  %v1346 = vlog2.pop %v1339
  %v1347 = vmul.f32 %v1346, 0.6931472
  %v1348 = vsel %vm1320, %v1316, %v1341
  %v1349 = vsel %vm1321, %v1317, %v1343
  %v1350 = vsel %vm1322, %v1318, %v1345
  %v1351 = vsel %vm1323, %v1319, %v1347
  %1352 = vst.msk [vmem:[%s6] sm:$0xff] %vm199, %v1348
  %1353 = vst.msk [vmem:[%s6 + $0x8] sm:$0xff] %vm199, %v1349
  %1354 = vst.msk [vmem:[%s6 + $0x10] sm:$0xff] %vm199, %v1350
  %1355 = vst.msk [vmem:[%s6 + $0x18] sm:$0xff] %vm199, %v1351
  // Predicated region
  $region26: #{tpu_custom_call.1} parent=0 // pred_check
    _
  $region27: #{tpu_custom_call.1} parent=0 // pred_check_branch
    %1357 = sbr.rel (0) target = $region29
  $region28: #{tpu_custom_call.1} parent=0 // pred_region
    _
  $region29: #{tpu_custom_call.1} parent=0 // pred_fallthru
    _
  // Predicated region
  $region30: #{tpu_custom_call.1} parent=0 // pred_check
    _
  $region31: #{tpu_custom_call.1} parent=0 // pred_check_branch
    %1359 = sbr.rel (0) target = $region33
  $region32: #{tpu_custom_call.1} parent=0 // pred_region
    _
  $region33: #{tpu_custom_call.1} parent=0 // pred_fallthru
    _

</llo_original>
